<compile_context>
chip_gen: v6e
topology: v6e:2x2x1
jax: 0.10.0
libtpu: 0.0.40
codegen_flags: <defaults>
</compile_context>

<pallas_src>
import functools

import jax
import jax.numpy as jnp
from jax.experimental import pallas as pl
from jax.experimental.pallas import tpu as pltpu


def _mha_kernel(x_ref, wq_ref, bq_ref, wkv_ref, bkv_ref, wproj_ref, bproj_ref,
                o_ref, k_scr, v_scr, acc_ref, *, head_dim, group, q_tile):
    """One grid step handles one (batch, query-tile, head-group)."""
    q_idx = pl.program_id(1)
    hg = pl.program_id(2)
    gdh = group * head_dim
    scale = head_dim ** (-0.5)
    cdt = x_ref.dtype  # MXU operand dtype (bf16 by default); accumulation is f32

    # ---- cache this head-group's K^T / V for the full sequence, once per (b, hg) ----
    @pl.when(q_idx == 0)
    def _():
        xf = x_ref[0]                                                    # (L, C)
        kv = jnp.dot(xf, wkv_ref[hg], preferred_element_type=jnp.float32)
        kv = (kv + bkv_ref[hg]).astype(cdt)                              # (L, 2*gdh)
        k_scr[hg] = kv[:, :gdh].T                                        # (gdh, L), pre-transposed
        v_scr[hg] = kv[:, gdh:]                                          # (L, gdh)

    # ---- init the f32 output accumulator with the projection bias at group 0 ----
    @pl.when(hg == 0)
    def _():
        acc_ref[...] = jnp.broadcast_to(bproj_ref[...], acc_ref.shape)

    # ---- Q projection for this query tile / head-group (scale folded into Q) ----
    q_start = pl.multiple_of(q_idx * q_tile, q_tile)
    xq = x_ref[0, pl.ds(q_start, q_tile), :]                             # (TQ, C)
    qh = jnp.dot(xq, wq_ref[hg], preferred_element_type=jnp.float32) + bq_ref[hg]
    qh = (qh * scale).astype(cdt)                                        # (TQ, gdh)

    kt = k_scr[hg]                                                       # (gdh, L)
    vv = v_scr[hg]                                                       # (L, gdh)

    # ---- per-head attention within the group; softmax stats in f32 ----
    ctx_parts = []
    for g in range(group):                                               # small static loop (G heads)
        lo, hi = g * head_dim, (g + 1) * head_dim
        s = jnp.dot(qh[:, lo:hi], kt[lo:hi, :],
                    preferred_element_type=jnp.float32)                  # (TQ, L)
        m = jnp.max(s, axis=-1, keepdims=True)
        sm = s - m
        if jnp.dtype(cdt) != jnp.float32:
            sm = sm.astype(cdt)          # bf16 exp -> ~2x EUP throughput on v6e/v7x
        p = jnp.exp(sm)
        denom = jnp.sum(p.astype(jnp.float32), axis=-1, keepdims=True)   # f32 denom
        ctx = jnp.dot(p.astype(cdt), vv[:, lo:hi],
                      preferred_element_type=jnp.float32)                # (TQ, Dh)
        ctx = ctx * pl.reciprocal(denom, approx=True)                    # normalize after PV
        ctx_parts.append(ctx.astype(cdt))
    ctx_slab = ctx_parts[0] if group == 1 else jnp.concatenate(ctx_parts, axis=-1)

    # ---- head-group slab of the output projection, accumulated over groups ----
    acc_ref[...] += jnp.dot(ctx_slab, wproj_ref[hg],
                            preferred_element_type=jnp.float32)

    @pl.when(hg == pl.num_programs(2) - 1)
    def _():
        o_ref[0] = acc_ref[...].astype(o_ref.dtype)


def _vmem_capacity_bytes():
    try:
        info = pltpu.get_tpu_info()
        cap = getattr(info, "vmem_capacity_bytes", None)
        if cap:
            return int(cap)
    except Exception:
        pass
    return 64 * 1024 * 1024  # conservative (v7x-sized) fallback


def _pick_q_tile(L, small_vmem):
    prefs = (256, 512, 128) if small_vmem else (512, 256, 128)
    for t in prefs:
        if L % t == 0:
            return t
    return L  # TODO(synk): pad ragged L to a multiple of 128 for lane-dense tiles.


def _pick_head_group(num_heads, head_dim, lane_target):
    # Smallest divisor G of num_heads with G*head_dim >= lane_target, else all heads.
    for g in range(1, num_heads + 1):
        if num_heads % g == 0 and g * head_dim >= lane_target:
            return g
    return num_heads


def multi_head_attention(x, wqkv, bqkv, wproj, bproj, *, num_heads,
                         compute_dtype=jnp.bfloat16, lane_target=256):
    """x: (B, L, C); wqkv: (C, 3C); bqkv: (3C,); wproj: (C, C); bproj: (C,)."""
    B, L, C = x.shape
    H = num_heads
    assert C % H == 0, "embed_dim must be divisible by num_heads"
    Dh = C // H
    G = _pick_head_group(H, Dh, lane_target)   # heads per grid step (G*Dh lane-dense)
    HG = H // G
    GDh = G * Dh

    vmem_cap = _vmem_capacity_bytes()
    TQ = _pick_q_tile(L, vmem_cap < 96 * 1024 * 1024)
    NQ = L // TQ
    vmem_limit = max(min(int(vmem_cap * 0.85), vmem_cap - (8 << 20)), 32 << 20)

    cdt = jnp.dtype(compute_dtype)
    f32 = jnp.float32

    # Host-side re-layout: head-group-major weight slabs (bf16 MXU operands);
    # biases remain f32 (added to f32 accumulators).
    wq_g = jnp.transpose(wqkv[:, 0 * C:1 * C].reshape(C, HG, GDh), (1, 0, 2)).astype(cdt)
    wk_g = jnp.transpose(wqkv[:, 1 * C:2 * C].reshape(C, HG, GDh), (1, 0, 2))
    wv_g = jnp.transpose(wqkv[:, 2 * C:3 * C].reshape(C, HG, GDh), (1, 0, 2))
    wkv_g = jnp.concatenate([wk_g, wv_g], axis=-1).astype(cdt)            # (HG, C, 2*GDh)
    wproj_g = wproj.reshape(HG, GDh, C).astype(cdt)                       # (HG, GDh, C)

    bq_g = bqkv[0 * C:1 * C].reshape(HG, 1, GDh).astype(f32)
    bk_g = bqkv[1 * C:2 * C].reshape(HG, GDh)
    bv_g = bqkv[2 * C:3 * C].reshape(HG, GDh)
    bkv_g = jnp.concatenate([bk_g, bv_g], axis=-1).reshape(HG, 1, 2 * GDh).astype(f32)
    bproj2 = bproj.reshape(1, C).astype(f32)

    x_c = x.astype(cdt)

    kernel = functools.partial(_mha_kernel, head_dim=Dh, group=G, q_tile=TQ)
    const3 = lambda b, q, hg: (0, 0, 0)   # weights resident in VMEM, DMA'd once

    return pl.pallas_call(
        kernel,
        out_shape=jax.ShapeDtypeStruct((B, L, C), x.dtype),
        grid_spec=pltpu.PrefetchScalarGridSpec(
            num_scalar_prefetch=0,
            grid=(B, NQ, HG),
            in_specs=[
                pl.BlockSpec((1, L, C), lambda b, q, hg: (b, 0, 0)),      # x: full sequence
                pl.BlockSpec((HG, C, GDh), const3),                       # W_q   (resident)
                pl.BlockSpec((HG, 1, GDh), const3),                       # b_q
                pl.BlockSpec((HG, C, 2 * GDh), const3),                   # W_kv  (resident)
                pl.BlockSpec((HG, 1, 2 * GDh), const3),                   # b_kv
                pl.BlockSpec((HG, GDh, C), const3),                       # W_proj (resident)
                pl.BlockSpec((1, C), lambda b, q, hg: (0, 0)),            # b_proj
            ],
            out_specs=pl.BlockSpec((1, TQ, C), lambda b, q, hg: (b, q, 0)),
            scratch_shapes=[
                pltpu.VMEM((HG, GDh, L), cdt),      # K cache, stored transposed
                pltpu.VMEM((HG, L, GDh), cdt),      # V cache
                pltpu.VMEM((TQ, C), jnp.float32),   # f32 output accumulator (bias folded in)
            ],
        ),
        compiler_params=pltpu.CompilerParams(
            dimension_semantics=("parallel", "arbitrary", "arbitrary"),
            vmem_limit_bytes=vmem_limit,
        ),
    )(x_c, wq_g, bq_g, wkv_g, bkv_g, wproj_g, bproj2)


def _reference(x, wqkv, bqkv, wproj, bproj, num_heads):
    """Pure-JAX f32 reference mirroring the PyTorch forward."""
    B, L, C = x.shape
    hd = C // num_heads
    qkv = x @ wqkv + bqkv                                       # (B, L, 3C)
    qkv = qkv.reshape(B, L, 3, num_heads, hd).transpose(2, 0, 3, 1, 4)
    q, k, v = qkv[0], qkv[1], qkv[2]                            # (B, H, L, hd)
    attn = jnp.einsum("bhld,bhmd->bhlm", q, k) * (hd ** -0.5)
    attn = jax.nn.softmax(attn, axis=-1)
    out = jnp.einsum("bhlm,bhmd->bhld", attn, v)                # (B, H, L, hd)
    out = out.transpose(0, 2, 1, 3).reshape(B, L, C)
    return out @ wproj + bproj


if __name__ == "__main__":
    B, L, C = 2, 8, 32
    num_heads = 4

    key = jax.random.PRNGKey(0)
    k1, k2, k3, k4, k5 = jax.random.split(key, 5)

    x = jax.random.normal(k1, (B, L, C), dtype=jnp.float32)
    # Deterministic parameter init (shapes from nn.Linear(C, 3C) / nn.Linear(C, C)).
    wqkv = jax.random.normal(k2, (C, 3 * C), dtype=jnp.float32) * 0.05
    bqkv = jax.random.normal(k3, (3 * C,), dtype=jnp.float32) * 0.05
    wproj = jax.random.normal(k4, (C, C), dtype=jnp.float32) * 0.05
    bproj = jax.random.normal(k5, (C,), dtype=jnp.float32) * 0.05

    out = multi_head_attention(x, wqkv, bqkv, wproj, bproj, num_heads=num_heads)
    out = jax.block_until_ready(out)

    ref = _reference(x, wqkv, bqkv, wproj, bproj, num_heads)
    assert out.shape == (B, L, C)
    # Tolerance accounts for bf16 MXU operands / bf16 exp and the approximate
    # (EUP) reciprocal in the softmax normalization.
    assert jnp.allclose(out, ref, atol=3e-2, rtol=3e-2), (
        "mismatch vs reference: max abs err = %f"
        % float(jnp.max(jnp.abs(out - ref))))

    print("KERNEL_OK")
</pallas_src>

<mosaic_0001>
module attributes {stable_mosaic.version = 11 : i64} {
  func.func @_mha_kernel(%arg0: i32, %arg1: i32, %arg2: i32, %arg3: memref<1x8x32xbf16, #tpu.memory_space<vmem>>, %arg4: memref<1x32x32xbf16, #tpu.memory_space<vmem>>, %arg5: memref<1x1x32xf32, #tpu.memory_space<vmem>>, %arg6: memref<1x32x64xbf16, #tpu.memory_space<vmem>>, %arg7: memref<1x1x64xf32, #tpu.memory_space<vmem>>, %arg8: memref<1x32x32xbf16, #tpu.memory_space<vmem>>, %arg9: memref<1x32xf32, #tpu.memory_space<vmem>>, %arg10: memref<1x8x32xf32, #tpu.memory_space<vmem>>, %arg11: memref<1x32x8xbf16, #tpu.memory_space<vmem>>, %arg12: memref<1x8x32xbf16, #tpu.memory_space<vmem>>, %arg13: memref<8x32xf32, #tpu.memory_space<vmem>>) attributes {dimension_semantics = [#tpu.dimension_semantics<parallel>, #tpu.dimension_semantics<arbitrary>, #tpu.dimension_semantics<arbitrary>], iteration_bounds = array<i64: 2, 1, 1>, scalar_prefetch = 0 : i64, scratch_operands = 3 : i64, tpu.core_type = #tpu.core_type<tc>, window_params = [{transform_indices = @transform_0, window_bounds = array<i64: 1, 8, 32>}, {pipeline_mode = #tpu.pipeline_mode<synchronous>, transform_indices = @transform_1, window_bounds = array<i64: 1, 32, 32>}, {pipeline_mode = #tpu.pipeline_mode<synchronous>, transform_indices = @transform_2, window_bounds = array<i64: 1, 1, 32>}, {pipeline_mode = #tpu.pipeline_mode<synchronous>, transform_indices = @transform_3, window_bounds = array<i64: 1, 32, 64>}, {pipeline_mode = #tpu.pipeline_mode<synchronous>, transform_indices = @transform_4, window_bounds = array<i64: 1, 1, 64>}, {pipeline_mode = #tpu.pipeline_mode<synchronous>, transform_indices = @transform_5, window_bounds = array<i64: 1, 32, 32>}, {pipeline_mode = #tpu.pipeline_mode<synchronous>, transform_indices = @transform_6, window_bounds = array<i64: 1, 32>}, {transform_indices = @transform_7, window_bounds = array<i64: 1, 8, 32>}]} {
    %c0_i32 = arith.constant 0 : i32
    %0 = arith.cmpi eq, %arg1, %c0_i32 : i32
    %1 = arith.extui %0 : i1 to i32
    %c0_i32_0 = arith.constant 0 : i32
    %2 = arith.cmpi ne, %1, %c0_i32_0 : i32
    scf.if %2 {
      %c0_38 = arith.constant 0 : index
      %c0_39 = arith.constant 0 : index
      %c0_40 = arith.constant 0 : index
      %112 = vector.load %arg3[%c0_38, %c0_39, %c0_40] : memref<1x8x32xbf16, #tpu.memory_space<vmem>>, vector<1x8x32xbf16>
      %113 = vector.shape_cast %112 : vector<1x8x32xbf16> to vector<8x32xbf16>
      %114 = arith.index_cast %arg2 : i32 to index
      %c0_41 = arith.constant 0 : index
      %c0_42 = arith.constant 0 : index
      %115 = vector.load %arg6[%114, %c0_41, %c0_42] : memref<1x32x64xbf16, #tpu.memory_space<vmem>>, vector<1x32x64xbf16>
      %116 = vector.shape_cast %115 : vector<1x32x64xbf16> to vector<32x64xbf16>
      %cst_43 = arith.constant dense<0.000000e+00> : vector<8x64xf32>
      %117 = tpu.matmul %113, %116, %cst_43 {dimension_numbers = #tpu.dot_dimension_numbers<[1], [0], [0], [1], [0, 0, 1, 1], [], []>} : vector<8x32xbf16>, vector<32x64xbf16>, vector<8x64xf32> -> vector<8x64xf32>
      %118 = arith.index_cast %arg2 : i32 to index
      %c0_44 = arith.constant 0 : index
      %c0_45 = arith.constant 0 : index
      %119 = vector.load %arg7[%118, %c0_44, %c0_45] : memref<1x1x64xf32, #tpu.memory_space<vmem>>, vector<1x1x64xf32>
      %120 = vector.shape_cast %119 : vector<1x1x64xf32> to vector<1x64xf32>
      %121 = vector.broadcast %120 : vector<1x64xf32> to vector<8x64xf32>
      %122 = arith.addf %117, %121 : vector<8x64xf32>
      %123 = arith.truncf %122 : vector<8x64xf32> to vector<8x64xbf16>
      %124 = vector.extract_strided_slice %123 {offsets = [0, 0], sizes = [8, 32], strides = [1, 1]} : vector<8x64xbf16> to vector<8x32xbf16>
      %125 = tpu.transpose %124, [1, 0] : vector<8x32xbf16> -> vector<32x8xbf16>
      %126 = arith.index_cast %arg2 : i32 to index
      %c0_46 = arith.constant 0 : index
      %c0_47 = arith.constant 0 : index
      %127 = vector.load %arg11[%126, %c0_46, %c0_47] : memref<1x32x8xbf16, #tpu.memory_space<vmem>>, vector<1x32x8xbf16>
      %128 = vector.shape_cast %127 : vector<1x32x8xbf16> to vector<32x8xbf16>
      %129 = vector.shape_cast %125 : vector<32x8xbf16> to vector<1x32x8xbf16>
      tpu.vector_store %arg11[%126, %c0_46, %c0_47], %129 {strides = array<i32>} : memref<1x32x8xbf16, #tpu.memory_space<vmem>>, vector<1x32x8xbf16>,
      %130 = vector.extract_strided_slice %123 {offsets = [0, 32], sizes = [8, 32], strides = [1, 1]} : vector<8x64xbf16> to vector<8x32xbf16>
      %131 = arith.index_cast %arg2 : i32 to index
      %c0_48 = arith.constant 0 : index
      %c0_49 = arith.constant 0 : index
      %132 = vector.load %arg12[%131, %c0_48, %c0_49] : memref<1x8x32xbf16, #tpu.memory_space<vmem>>, vector<1x8x32xbf16>
      %133 = vector.shape_cast %132 : vector<1x8x32xbf16> to vector<8x32xbf16>
      %134 = vector.shape_cast %130 : vector<8x32xbf16> to vector<1x8x32xbf16>
      tpu.vector_store %arg12[%131, %c0_48, %c0_49], %134 {strides = array<i32>} : memref<1x8x32xbf16, #tpu.memory_space<vmem>>, vector<1x8x32xbf16>,
    } else {
    }
    %c0_i32_1 = arith.constant 0 : i32
    %3 = arith.cmpi eq, %arg2, %c0_i32_1 : i32
    %4 = arith.extui %3 : i1 to i32
    %c0_i32_2 = arith.constant 0 : i32
    %5 = arith.cmpi ne, %4, %c0_i32_2 : i32
    scf.if %5 {
      %c0_38 = arith.constant 0 : index
      %c0_39 = arith.constant 0 : index
      %112 = vector.load %arg9[%c0_38, %c0_39] : memref<1x32xf32, #tpu.memory_space<vmem>>, vector<1x32xf32>
      %113 = vector.shape_cast %112 : vector<1x32xf32> to vector<1x32xf32>
      %114 = vector.broadcast %113 : vector<1x32xf32> to vector<8x32xf32>
      %c0_40 = arith.constant 0 : index
      %c0_41 = arith.constant 0 : index
      %115 = vector.load %arg13[%c0_40, %c0_41] : memref<8x32xf32, #tpu.memory_space<vmem>>, vector<8x32xf32>
      tpu.vector_store %arg13[%c0_40, %c0_41], %114 {strides = array<i32>} : memref<8x32xf32, #tpu.memory_space<vmem>>, vector<8x32xf32>,
    } else {
    }
    %c8_i32 = arith.constant 8 : i32
    %6 = arith.muli %arg1, %c8_i32 : i32
    %7 = tpu.assume_multiple %6, 8 : i32
    %c0 = arith.constant 0 : index
    %8 = arith.index_cast %7 : i32 to index
    %c0_3 = arith.constant 0 : index
    %9 = vector.load %arg3[%c0, %8, %c0_3] : memref<1x8x32xbf16, #tpu.memory_space<vmem>>, vector<1x8x32xbf16>
    %10 = vector.shape_cast %9 : vector<1x8x32xbf16> to vector<8x32xbf16>
    %11 = arith.index_cast %arg2 : i32 to index
    %c0_4 = arith.constant 0 : index
    %c0_5 = arith.constant 0 : index
    %12 = vector.load %arg4[%11, %c0_4, %c0_5] : memref<1x32x32xbf16, #tpu.memory_space<vmem>>, vector<1x32x32xbf16>
    %13 = vector.shape_cast %12 : vector<1x32x32xbf16> to vector<32x32xbf16>
    %cst = arith.constant dense<0.000000e+00> : vector<8x32xf32>
    %14 = tpu.matmul %10, %13, %cst {dimension_numbers = #tpu.dot_dimension_numbers<[1], [0], [0], [1], [0, 0, 1, 1], [], []>} : vector<8x32xbf16>, vector<32x32xbf16>, vector<8x32xf32> -> vector<8x32xf32>
    %15 = arith.index_cast %arg2 : i32 to index
    %c0_6 = arith.constant 0 : index
    %c0_7 = arith.constant 0 : index
    %16 = vector.load %arg5[%15, %c0_6, %c0_7] : memref<1x1x32xf32, #tpu.memory_space<vmem>>, vector<1x1x32xf32>
    %17 = vector.shape_cast %16 : vector<1x1x32xf32> to vector<1x32xf32>
    %18 = vector.broadcast %17 : vector<1x32xf32> to vector<8x32xf32>
    %19 = arith.addf %14, %18 : vector<8x32xf32>
    %cst_8 = arith.constant 0.353553385 : f32
    %20 = vector.broadcast %cst_8 : f32 to vector<8x32xf32>
    %21 = arith.mulf %19, %20 : vector<8x32xf32>
    %22 = arith.truncf %21 : vector<8x32xf32> to vector<8x32xbf16>
    %23 = arith.index_cast %arg2 : i32 to index
    %c0_9 = arith.constant 0 : index
    %c0_10 = arith.constant 0 : index
    %24 = vector.load %arg11[%23, %c0_9, %c0_10] : memref<1x32x8xbf16, #tpu.memory_space<vmem>>, vector<1x32x8xbf16>
    %25 = vector.shape_cast %24 : vector<1x32x8xbf16> to vector<32x8xbf16>
    %26 = arith.index_cast %arg2 : i32 to index
    %c0_11 = arith.constant 0 : index
    %c0_12 = arith.constant 0 : index
    %27 = vector.load %arg12[%26, %c0_11, %c0_12] : memref<1x8x32xbf16, #tpu.memory_space<vmem>>, vector<1x8x32xbf16>
    %28 = vector.shape_cast %27 : vector<1x8x32xbf16> to vector<8x32xbf16>
    %29 = vector.extract_strided_slice %22 {offsets = [0, 0], sizes = [8, 8], strides = [1, 1]} : vector<8x32xbf16> to vector<8x8xbf16>
    %30 = vector.extract_strided_slice %25 {offsets = [0, 0], sizes = [8, 8], strides = [1, 1]} : vector<32x8xbf16> to vector<8x8xbf16>
    %cst_13 = arith.constant dense<0.000000e+00> : vector<8x8xf32>
    %31 = tpu.matmul %29, %30, %cst_13 {dimension_numbers = #tpu.dot_dimension_numbers<[1], [0], [0], [1], [0, 0, 1, 1], [], []>} : vector<8x8xbf16>, vector<8x8xbf16>, vector<8x8xf32> -> vector<8x8xf32>
    %cst_14 = arith.constant dense<0xFF800000> : vector<8xf32>
    %32 = vector.multi_reduction <maximumf>, %31, %cst_14 [1] : vector<8x8xf32> to vector<8xf32>
    %33 = vector.shape_cast %32 : vector<8xf32> to vector<8x1xf32>
    %34 = vector.broadcast %33 : vector<8x1xf32> to vector<8x8xf32>
    %35 = arith.subf %31, %34 : vector<8x8xf32>
    %36 = arith.truncf %35 : vector<8x8xf32> to vector<8x8xbf16>
    %37 = math.exp %36 : vector<8x8xbf16>
    %38 = arith.extf %37 : vector<8x8xbf16> to vector<8x8xf32>
    %cst_15 = arith.constant dense<0.000000e+00> : vector<8xf32>
    %39 = vector.multi_reduction <add>, %38, %cst_15 [1] : vector<8x8xf32> to vector<8xf32>
    %40 = vector.shape_cast %39 : vector<8xf32> to vector<8x1xf32>
    %41 = vector.extract_strided_slice %28 {offsets = [0, 0], sizes = [8, 8], strides = [1, 1]} : vector<8x32xbf16> to vector<8x8xbf16>
    %cst_16 = arith.constant dense<0.000000e+00> : vector<8x8xf32>
    %42 = tpu.matmul %37, %41, %cst_16 {dimension_numbers = #tpu.dot_dimension_numbers<[1], [0], [0], [1], [0, 0, 1, 1], [], []>} : vector<8x8xbf16>, vector<8x8xbf16>, vector<8x8xf32> -> vector<8x8xf32>
    %43 = tpu.reciprocal %40 {approx = true} : vector<8x1xf32> -> vector<8x1xf32>
    %44 = vector.broadcast %43 : vector<8x1xf32> to vector<8x8xf32>
    %45 = arith.mulf %42, %44 : vector<8x8xf32>
    %46 = arith.truncf %45 : vector<8x8xf32> to vector<8x8xbf16>
    %47 = vector.extract_strided_slice %22 {offsets = [0, 8], sizes = [8, 8], strides = [1, 1]} : vector<8x32xbf16> to vector<8x8xbf16>
    %48 = vector.extract_strided_slice %25 {offsets = [8, 0], sizes = [8, 8], strides = [1, 1]} : vector<32x8xbf16> to vector<8x8xbf16>
    %cst_17 = arith.constant dense<0.000000e+00> : vector<8x8xf32>
    %49 = tpu.matmul %47, %48, %cst_17 {dimension_numbers = #tpu.dot_dimension_numbers<[1], [0], [0], [1], [0, 0, 1, 1], [], []>} : vector<8x8xbf16>, vector<8x8xbf16>, vector<8x8xf32> -> vector<8x8xf32>
    %cst_18 = arith.constant dense<0xFF800000> : vector<8xf32>
    %50 = vector.multi_reduction <maximumf>, %49, %cst_18 [1] : vector<8x8xf32> to vector<8xf32>
    %51 = vector.shape_cast %50 : vector<8xf32> to vector<8x1xf32>
    %52 = vector.broadcast %51 : vector<8x1xf32> to vector<8x8xf32>
    %53 = arith.subf %49, %52 : vector<8x8xf32>
    %54 = arith.truncf %53 : vector<8x8xf32> to vector<8x8xbf16>
    %55 = math.exp %54 : vector<8x8xbf16>
    %56 = arith.extf %55 : vector<8x8xbf16> to vector<8x8xf32>
    %cst_19 = arith.constant dense<0.000000e+00> : vector<8xf32>
    %57 = vector.multi_reduction <add>, %56, %cst_19 [1] : vector<8x8xf32> to vector<8xf32>
    %58 = vector.shape_cast %57 : vector<8xf32> to vector<8x1xf32>
    %59 = vector.extract_strided_slice %28 {offsets = [0, 8], sizes = [8, 8], strides = [1, 1]} : vector<8x32xbf16> to vector<8x8xbf16>
    %cst_20 = arith.constant dense<0.000000e+00> : vector<8x8xf32>
    %60 = tpu.matmul %55, %59, %cst_20 {dimension_numbers = #tpu.dot_dimension_numbers<[1], [0], [0], [1], [0, 0, 1, 1], [], []>} : vector<8x8xbf16>, vector<8x8xbf16>, vector<8x8xf32> -> vector<8x8xf32>
    %61 = tpu.reciprocal %58 {approx = true} : vector<8x1xf32> -> vector<8x1xf32>
    %62 = vector.broadcast %61 : vector<8x1xf32> to vector<8x8xf32>
    %63 = arith.mulf %60, %62 : vector<8x8xf32>
    %64 = arith.truncf %63 : vector<8x8xf32> to vector<8x8xbf16>
    %65 = vector.extract_strided_slice %22 {offsets = [0, 16], sizes = [8, 8], strides = [1, 1]} : vector<8x32xbf16> to vector<8x8xbf16>
    %66 = vector.extract_strided_slice %25 {offsets = [16, 0], sizes = [8, 8], strides = [1, 1]} : vector<32x8xbf16> to vector<8x8xbf16>
    %cst_21 = arith.constant dense<0.000000e+00> : vector<8x8xf32>
    %67 = tpu.matmul %65, %66, %cst_21 {dimension_numbers = #tpu.dot_dimension_numbers<[1], [0], [0], [1], [0, 0, 1, 1], [], []>} : vector<8x8xbf16>, vector<8x8xbf16>, vector<8x8xf32> -> vector<8x8xf32>
    %cst_22 = arith.constant dense<0xFF800000> : vector<8xf32>
    %68 = vector.multi_reduction <maximumf>, %67, %cst_22 [1] : vector<8x8xf32> to vector<8xf32>
    %69 = vector.shape_cast %68 : vector<8xf32> to vector<8x1xf32>
    %70 = vector.broadcast %69 : vector<8x1xf32> to vector<8x8xf32>
    %71 = arith.subf %67, %70 : vector<8x8xf32>
    %72 = arith.truncf %71 : vector<8x8xf32> to vector<8x8xbf16>
    %73 = math.exp %72 : vector<8x8xbf16>
    %74 = arith.extf %73 : vector<8x8xbf16> to vector<8x8xf32>
    %cst_23 = arith.constant dense<0.000000e+00> : vector<8xf32>
    %75 = vector.multi_reduction <add>, %74, %cst_23 [1] : vector<8x8xf32> to vector<8xf32>
    %76 = vector.shape_cast %75 : vector<8xf32> to vector<8x1xf32>
    %77 = vector.extract_strided_slice %28 {offsets = [0, 16], sizes = [8, 8], strides = [1, 1]} : vector<8x32xbf16> to vector<8x8xbf16>
    %cst_24 = arith.constant dense<0.000000e+00> : vector<8x8xf32>
    %78 = tpu.matmul %73, %77, %cst_24 {dimension_numbers = #tpu.dot_dimension_numbers<[1], [0], [0], [1], [0, 0, 1, 1], [], []>} : vector<8x8xbf16>, vector<8x8xbf16>, vector<8x8xf32> -> vector<8x8xf32>
    %79 = tpu.reciprocal %76 {approx = true} : vector<8x1xf32> -> vector<8x1xf32>
    %80 = vector.broadcast %79 : vector<8x1xf32> to vector<8x8xf32>
    %81 = arith.mulf %78, %80 : vector<8x8xf32>
    %82 = arith.truncf %81 : vector<8x8xf32> to vector<8x8xbf16>
    %83 = vector.extract_strided_slice %22 {offsets = [0, 24], sizes = [8, 8], strides = [1, 1]} : vector<8x32xbf16> to vector<8x8xbf16>
    %84 = vector.extract_strided_slice %25 {offsets = [24, 0], sizes = [8, 8], strides = [1, 1]} : vector<32x8xbf16> to vector<8x8xbf16>
    %cst_25 = arith.constant dense<0.000000e+00> : vector<8x8xf32>
    %85 = tpu.matmul %83, %84, %cst_25 {dimension_numbers = #tpu.dot_dimension_numbers<[1], [0], [0], [1], [0, 0, 1, 1], [], []>} : vector<8x8xbf16>, vector<8x8xbf16>, vector<8x8xf32> -> vector<8x8xf32>
    %cst_26 = arith.constant dense<0xFF800000> : vector<8xf32>
    %86 = vector.multi_reduction <maximumf>, %85, %cst_26 [1] : vector<8x8xf32> to vector<8xf32>
    %87 = vector.shape_cast %86 : vector<8xf32> to vector<8x1xf32>
    %88 = vector.broadcast %87 : vector<8x1xf32> to vector<8x8xf32>
    %89 = arith.subf %85, %88 : vector<8x8xf32>
    %90 = arith.truncf %89 : vector<8x8xf32> to vector<8x8xbf16>
    %91 = math.exp %90 : vector<8x8xbf16>
    %92 = arith.extf %91 : vector<8x8xbf16> to vector<8x8xf32>
    %cst_27 = arith.constant dense<0.000000e+00> : vector<8xf32>
    %93 = vector.multi_reduction <add>, %92, %cst_27 [1] : vector<8x8xf32> to vector<8xf32>
    %94 = vector.shape_cast %93 : vector<8xf32> to vector<8x1xf32>
    %95 = vector.extract_strided_slice %28 {offsets = [0, 24], sizes = [8, 8], strides = [1, 1]} : vector<8x32xbf16> to vector<8x8xbf16>
    %cst_28 = arith.constant dense<0.000000e+00> : vector<8x8xf32>
    %96 = tpu.matmul %91, %95, %cst_28 {dimension_numbers = #tpu.dot_dimension_numbers<[1], [0], [0], [1], [0, 0, 1, 1], [], []>} : vector<8x8xbf16>, vector<8x8xbf16>, vector<8x8xf32> -> vector<8x8xf32>
    %97 = tpu.reciprocal %94 {approx = true} : vector<8x1xf32> -> vector<8x1xf32>
    %98 = vector.broadcast %97 : vector<8x1xf32> to vector<8x8xf32>
    %99 = arith.mulf %96, %98 : vector<8x8xf32>
    %100 = arith.truncf %99 : vector<8x8xf32> to vector<8x8xbf16>
    %101 = tpu.concatenate %46, %64, %82, %100 in 1 : vector<8x8xbf16>, vector<8x8xbf16>, vector<8x8xbf16>, vector<8x8xbf16> -> vector<8x32xbf16>
    %c0_29 = arith.constant 0 : index
    %c0_30 = arith.constant 0 : index
    %102 = vector.load %arg13[%c0_29, %c0_30] : memref<8x32xf32, #tpu.memory_space<vmem>>, vector<8x32xf32>
    %103 = arith.index_cast %arg2 : i32 to index
    %c0_31 = arith.constant 0 : index
    %c0_32 = arith.constant 0 : index
    %104 = vector.load %arg8[%103, %c0_31, %c0_32] : memref<1x32x32xbf16, #tpu.memory_space<vmem>>, vector<1x32x32xbf16>
    %105 = vector.shape_cast %104 : vector<1x32x32xbf16> to vector<32x32xbf16>
    %cst_33 = arith.constant dense<0.000000e+00> : vector<8x32xf32>
    %106 = tpu.matmul %101, %105, %cst_33 {dimension_numbers = #tpu.dot_dimension_numbers<[1], [0], [0], [1], [0, 0, 1, 1], [], []>} : vector<8x32xbf16>, vector<32x32xbf16>, vector<8x32xf32> -> vector<8x32xf32>
    %107 = arith.addf %102, %106 : vector<8x32xf32>
    %c0_34 = arith.constant 0 : index
    %c0_35 = arith.constant 0 : index
    %108 = vector.load %arg13[%c0_34, %c0_35] : memref<8x32xf32, #tpu.memory_space<vmem>>, vector<8x32xf32>
    tpu.vector_store %arg13[%c0_34, %c0_35], %107 {strides = array<i32>} : memref<8x32xf32, #tpu.memory_space<vmem>>, vector<8x32xf32>,
    %c0_i32_36 = arith.constant 0 : i32
    %109 = arith.cmpi eq, %arg2, %c0_i32_36 : i32
    %110 = arith.extui %109 : i1 to i32
    %c0_i32_37 = arith.constant 0 : i32
    %111 = arith.cmpi ne, %110, %c0_i32_37 : i32
    scf.if %111 {
      %c0_38 = arith.constant 0 : index
      %c0_39 = arith.constant 0 : index
      %112 = vector.load %arg13[%c0_38, %c0_39] : memref<8x32xf32, #tpu.memory_space<vmem>>, vector<8x32xf32>
      %c0_40 = arith.constant 0 : index
      %c0_41 = arith.constant 0 : index
      %c0_42 = arith.constant 0 : index
      %113 = vector.load %arg10[%c0_40, %c0_41, %c0_42] : memref<1x8x32xf32, #tpu.memory_space<vmem>>, vector<1x8x32xf32>
      %114 = vector.shape_cast %113 : vector<1x8x32xf32> to vector<8x32xf32>
      %115 = vector.shape_cast %112 : vector<8x32xf32> to vector<1x8x32xf32>
      tpu.vector_store %arg10[%c0_40, %c0_41, %c0_42], %115 {strides = array<i32>} : memref<1x8x32xf32, #tpu.memory_space<vmem>>, vector<1x8x32xf32>,
    } else {
    }
    return
  }
  func.func @transform_0(%arg0: i32, %arg1: i32, %arg2: i32) -> (i32, i32, i32) {
    %c0_i32 = arith.constant 0 : i32
    %c0_i32_0 = arith.constant 0 : i32
    %c0_i32_1 = arith.constant 0 : i32
    return %arg0, %c0_i32, %c0_i32_0 : i32, i32, i32
  }
  func.func @transform_1(%arg0: i32, %arg1: i32, %arg2: i32) -> (i32, i32, i32) {
    %c0_i32 = arith.constant 0 : i32
    %c0_i32_0 = arith.constant 0 : i32
    %c0_i32_1 = arith.constant 0 : i32
    %c0_i32_2 = arith.constant 0 : i32
    return %c0_i32, %c0_i32_0, %c0_i32_1 : i32, i32, i32
  }
  func.func @transform_2(%arg0: i32, %arg1: i32, %arg2: i32) -> (i32, i32, i32) {
    %c0_i32 = arith.constant 0 : i32
    %c0_i32_0 = arith.constant 0 : i32
    %c0_i32_1 = arith.constant 0 : i32
    %c0_i32_2 = arith.constant 0 : i32
    return %c0_i32, %c0_i32_0, %c0_i32_1 : i32, i32, i32
  }
  func.func @transform_3(%arg0: i32, %arg1: i32, %arg2: i32) -> (i32, i32, i32) {
    %c0_i32 = arith.constant 0 : i32
    %c0_i32_0 = arith.constant 0 : i32
    %c0_i32_1 = arith.constant 0 : i32
    %c0_i32_2 = arith.constant 0 : i32
    return %c0_i32, %c0_i32_0, %c0_i32_1 : i32, i32, i32
  }
  func.func @transform_4(%arg0: i32, %arg1: i32, %arg2: i32) -> (i32, i32, i32) {
    %c0_i32 = arith.constant 0 : i32
    %c0_i32_0 = arith.constant 0 : i32
    %c0_i32_1 = arith.constant 0 : i32
    %c0_i32_2 = arith.constant 0 : i32
    return %c0_i32, %c0_i32_0, %c0_i32_1 : i32, i32, i32
  }
  func.func @transform_5(%arg0: i32, %arg1: i32, %arg2: i32) -> (i32, i32, i32) {
    %c0_i32 = arith.constant 0 : i32
    %c0_i32_0 = arith.constant 0 : i32
    %c0_i32_1 = arith.constant 0 : i32
    %c0_i32_2 = arith.constant 0 : i32
    return %c0_i32, %c0_i32_0, %c0_i32_1 : i32, i32, i32
  }
  func.func @transform_6(%arg0: i32, %arg1: i32, %arg2: i32) -> (i32, i32) {
    %c0_i32 = arith.constant 0 : i32
    %c0_i32_0 = arith.constant 0 : i32
    %c0_i32_1 = arith.constant 0 : i32
    return %c0_i32, %c0_i32_0 : i32, i32
  }
  func.func @transform_7(%arg0: i32, %arg1: i32, %arg2: i32) -> (i32, i32, i32) {
    %c0_i32 = arith.constant 0 : i32
    %c0_i32_0 = arith.constant 0 : i32
    return %arg0, %arg1, %c0_i32 : i32, i32, i32
  }
}

</mosaic_0001>

<llo_original>
// kernel: tpu_custom_call.1
$region0: #{tpu_custom_call.1}
  #allocation0 [shape = 'u32[]', space=smem, size = 0x4, offset = 0x4, fixed_abs, tag = 'smem constant byte address 0x4 - core index']
  #allocation1 [shape = 'u32[144,128]{1,0:T(1,128)}', space=vmem, size = 0x12000, scoped, tag = 'internal scratch']
  #allocation2 [shape = 'bf16[1,32,8]{2,1,0:T(8,128)(2,1)}', space=vmem, size = 0x2000, scoped, tag = 'scratch operand']
  #allocation3 [shape = 'bf16[1,8,32]{2,1,0:T(8,128)(2,1)}', space=vmem, size = 0x800, scoped, tag = 'scratch operand']
  #allocation4 [shape = 'f32[8,32]{1,0:T(8,128)}', space=vmem, size = 0x1000, scoped, tag = 'scratch operand']
  %s0 = inlined_call_operand.hbm [shape: bf16[2,8,32], index: 0, kind: input, shape index: {}]
  %s1 = inlined_call_operand.hbm [shape: bf16[1,32,32], index: 1, kind: input, shape index: {}]
  %s2 = inlined_call_operand.vmem [shape: f32[1,1,32], index: 2, kind: input, shape index: {}]
  %s3 = inlined_call_operand.hbm [shape: bf16[1,32,64], index: 3, kind: input, shape index: {}]
  %s4 = inlined_call_operand.vmem [shape: f32[1,1,64], index: 4, kind: input, shape index: {}]
  %s5 = inlined_call_operand.hbm [shape: bf16[1,32,32], index: 5, kind: input, shape index: {}]
  %s6 = inlined_call_operand.vmem [shape: f32[1,32], index: 6, kind: input, shape index: {}]
  %s7 = inlined_call_operand.hbm [shape: f32[2,8,32], index: 7, kind: output, shape index: {}]
  %s8 = sld [smem:[#allocation0]]
  $region89: #{tpu_custom_call.1} parent=0
    _
  %s10 = ssub.s32 1, %s8
  %s11 = scalar_select 0, %s10, %s8
  $region1: #{tpu_custom_call.1} parent=0
    #allocation5 [shape = 'u8[4096]{0}', space=vmem, size = 0x1000, scoped, tag = 'input window, operand 0']
    #allocation6 [shape = 's32[2]{0}', space=sflag, size = 0x8, scoped, tag = 'scoped memory for tpu_custom_call.1']
    #allocation7 [shape = 's32[2]{0}', space=sflag, size = 0x8, scoped, tag = 'scoped memory for tpu_custom_call.1']
    #allocation8 [shape = 'u8[8192]{0}', space=vmem, size = 0x2000, scoped, tag = 'input window, operand 1, single buffered']
    #allocation9 [shape = 's32[1]{0}', space=sflag, size = 0x4, scoped, tag = 'scoped memory for tpu_custom_call.1']
    #allocation10 [shape = 'u8[8192]{0}', space=vmem, size = 0x2000, scoped, tag = 'input window, operand 3, single buffered']
    #allocation11 [shape = 'u8[8192]{0}', space=vmem, size = 0x2000, scoped, tag = 'input window, operand 5, single buffered']
    #allocation12 [shape = 's32[1]{0}', space=sflag, size = 0x4, scoped, tag = 'scoped memory for tpu_custom_call.1']
    #allocation13 [shape = 'u8[8192]{0}', space=vmem, size = 0x2000, scoped, tag = 'output window, operand 0']
    %12 = vsyncpa [#allocation6], 0
    %s13 = scalar_lea.sflag [#allocation6], 1
    %14 = vsyncpa %s13, 0
    %15 = vsyncpa [#allocation9], 0
    %16 = vsyncpa [#allocation12], 0
    %17 = vsyncpa [#allocation7], 0
    %s18 = scalar_lea.sflag [#allocation7], 1
    %19 = vsyncpa %s18, 0
    loop: start=0, step=1, limit=4
    $region2: #{tpu_custom_call.1} parent=1 // loop_pre_header
      _
    $region3: #{tpu_custom_call.1} parent=1 // loop_header
      %s21 = sphi 0, %s25
      %p22 = scmp.ge.s32.totalorder %s21, 4
      %s28 = sphi 0, %s47
      %s29 = sphi 0, %s43
      %s30 = sphi 0, %s39
      %s31 = sphi 0, %s28
      %s32 = sphi 0, %s29
      %s33 = sphi 0, %s30
      %s34 = sphi 0, %s31
      %s35 = sphi 0, %s32
      %s36 = sphi 0, %s33
      %s50 = sphi 0, %s52
      %s53 = sphi 0, %s50
      %s54 = sphi 0, %s53
      %s70 = sphi 0, %s54
      %s74 = sphi 0, %s74
      %s76 = sphi 0, %s74
      %s77 = sphi 0, %s76
      %s91 = sphi 0, %s77
      %s95 = sphi 0, %s95
      %s97 = sphi 0, %s95
      %s98 = sphi 0, %s97
      %s112 = sphi 0, %s98
      %s116 = sphi 0, %s116
      %s118 = sphi 0, %s116
      %s119 = sphi 0, %s118
      %s133 = sphi 0, %s119
      %s137 = sphi 0, %s137
      %s139 = sphi 0, %s137
      %s140 = sphi 0, %s139
      %s154 = sphi 0, %s140
      %s158 = sphi 0, %s158
      %s160 = sphi 0, %s158
      %s161 = sphi 0, %s160
      %s175 = sphi 0, %s161
      %s179 = sphi 0, %s179
      %s181 = sphi 0, %s179
      %s182 = sphi 0, %s181
      %s196 = sphi 0, %s182
      %s204 = sphi 0, %s206
      %s207 = sphi 0, %s204
      %s208 = sphi 0, %s207
      %s224 = sphi 0, %s208
    $region4: #{tpu_custom_call.1} parent=1 // loop_header_branch
      %24 = sbr.rel (%p22) target = $region8
    $region5: #{tpu_custom_call.1} parent=1 // loop_body
      %s26 = ssub.s32 %s21, 1
      %s27 = ssub.s32 %s21, 2
      %s37 = sadd.s32 1, %s30
      %p38 = scmp.ge.s32.totalorder %s37, 1
      %s39 = scalar_select %p38, 0, %s37
      %s40 = sadd.s32 1, %s29
      %s41 = scalar_select %p38, %s40, %s29
      %p42 = scmp.ge.s32.totalorder %s41, 1
      %s43 = scalar_select %p42, 0, %s41
      %s44 = sadd.s32 1, %s28
      %s45 = scalar_select %p42, %s44, %s28
      %p46 = scmp.ge.s32.totalorder %s45, 2
      %s47 = scalar_select %p46, 0, %s45
      %s48 = ssub.s32 %s28, %s47
      %p49 = scmp.eq.s32.totalorder %s48, 0
      %s51 = sadd.s32 %s50, 1
      %s52 = scalar_select %p49, %s50, %s51
      %p55 = pneg %p49
      %p56 = scmp.eq.s32.totalorder %s21, 1
      %p57 = por %p55, %p56
      %p58 = scmp.ne.s32.totalorder %s50, %s53
      %p59 = scmp.eq.s32.totalorder %s21, 0
      %p60 = por %p58, %p59
      %p61 = scmp.ne.s32.totalorder %s50, %s53
      %p62 = scmp.eq.s32.totalorder %s26, 1
      %p63 = por %p61, %p62
      %p64 = scmp.ne.s32.totalorder %s53, %s54
      %p65 = scmp.eq.s32.totalorder %s26, 0
      %p66 = por %p64, %p65
      %p67 = scmp.ne.s32.totalorder %s53, %s54
      %p68 = scmp.eq.s32.totalorder %s27, 1
      %p69 = por %p67, %p68
      %p71 = scmp.ne.s32.totalorder %s54, %s70
      %p72 = scmp.eq.s32.totalorder %s27, 0
      %p73 = por %p71, %p72
      %s75 = sadd.s32 %s74, 1
      %p78 = scmp.eq.s32.totalorder %s21, 1
      %p79 = scmp.ne.s32.totalorder %s74, %s76
      %p80 = scmp.eq.s32.totalorder %s21, 0
      %p81 = por %p79, %p80
      %p82 = scmp.ne.s32.totalorder %s74, %s76
      %p83 = scmp.eq.s32.totalorder %s26, 1
      %p84 = por %p82, %p83
      %p85 = scmp.ne.s32.totalorder %s76, %s77
      %p86 = scmp.eq.s32.totalorder %s26, 0
      %p87 = por %p85, %p86
      %p88 = scmp.ne.s32.totalorder %s76, %s77
      %p89 = scmp.eq.s32.totalorder %s27, 1
      %p90 = por %p88, %p89
      %p92 = scmp.ne.s32.totalorder %s77, %s91
      %p93 = scmp.eq.s32.totalorder %s27, 0
      %p94 = por %p92, %p93
      %s96 = sadd.s32 %s95, 1
      %p99 = scmp.eq.s32.totalorder %s21, 1
      %p100 = scmp.ne.s32.totalorder %s95, %s97
      %p101 = scmp.eq.s32.totalorder %s21, 0
      %p102 = por %p100, %p101
      %p103 = scmp.ne.s32.totalorder %s95, %s97
      %p104 = scmp.eq.s32.totalorder %s26, 1
      %p105 = por %p103, %p104
      %p106 = scmp.ne.s32.totalorder %s97, %s98
      %p107 = scmp.eq.s32.totalorder %s26, 0
      %p108 = por %p106, %p107
      %p109 = scmp.ne.s32.totalorder %s97, %s98
      %p110 = scmp.eq.s32.totalorder %s27, 1
      %p111 = por %p109, %p110
      %p113 = scmp.ne.s32.totalorder %s98, %s112
      %p114 = scmp.eq.s32.totalorder %s27, 0
      %p115 = por %p113, %p114
      %s117 = sadd.s32 %s116, 1
      %p120 = scmp.eq.s32.totalorder %s21, 1
      %p121 = scmp.ne.s32.totalorder %s116, %s118
      %p122 = scmp.eq.s32.totalorder %s21, 0
      %p123 = por %p121, %p122
      %p124 = scmp.ne.s32.totalorder %s116, %s118
      %p125 = scmp.eq.s32.totalorder %s26, 1
      %p126 = por %p124, %p125
      %p127 = scmp.ne.s32.totalorder %s118, %s119
      %p128 = scmp.eq.s32.totalorder %s26, 0
      %p129 = por %p127, %p128
      %p130 = scmp.ne.s32.totalorder %s118, %s119
      %p131 = scmp.eq.s32.totalorder %s27, 1
      %p132 = por %p130, %p131
      %p134 = scmp.ne.s32.totalorder %s119, %s133
      %p135 = scmp.eq.s32.totalorder %s27, 0
      %p136 = por %p134, %p135
      %s138 = sadd.s32 %s137, 1
      %p141 = scmp.eq.s32.totalorder %s21, 1
      %p142 = scmp.ne.s32.totalorder %s137, %s139
      %p143 = scmp.eq.s32.totalorder %s21, 0
      %p144 = por %p142, %p143
      %p145 = scmp.ne.s32.totalorder %s137, %s139
      %p146 = scmp.eq.s32.totalorder %s26, 1
      %p147 = por %p145, %p146
      %p148 = scmp.ne.s32.totalorder %s139, %s140
      %p149 = scmp.eq.s32.totalorder %s26, 0
      %p150 = por %p148, %p149
      %p151 = scmp.ne.s32.totalorder %s139, %s140
      %p152 = scmp.eq.s32.totalorder %s27, 1
      %p153 = por %p151, %p152
      %p155 = scmp.ne.s32.totalorder %s140, %s154
      %p156 = scmp.eq.s32.totalorder %s27, 0
      %p157 = por %p155, %p156
      %s159 = sadd.s32 %s158, 1
      %p162 = scmp.eq.s32.totalorder %s21, 1
      %p163 = scmp.ne.s32.totalorder %s158, %s160
      %p164 = scmp.eq.s32.totalorder %s21, 0
      %p165 = por %p163, %p164
      %p166 = scmp.ne.s32.totalorder %s158, %s160
      %p167 = scmp.eq.s32.totalorder %s26, 1
      %p168 = por %p166, %p167
      %p169 = scmp.ne.s32.totalorder %s160, %s161
      %p170 = scmp.eq.s32.totalorder %s26, 0
      %p171 = por %p169, %p170
      %p172 = scmp.ne.s32.totalorder %s160, %s161
      %p173 = scmp.eq.s32.totalorder %s27, 1
      %p174 = por %p172, %p173
      %p176 = scmp.ne.s32.totalorder %s161, %s175
      %p177 = scmp.eq.s32.totalorder %s27, 0
      %p178 = por %p176, %p177
      %s180 = sadd.s32 %s179, 1
      %p183 = scmp.eq.s32.totalorder %s21, 1
      %p184 = scmp.ne.s32.totalorder %s179, %s181
      %p185 = scmp.eq.s32.totalorder %s21, 0
      %p186 = por %p184, %p185
      %p187 = scmp.ne.s32.totalorder %s179, %s181
      %p188 = scmp.eq.s32.totalorder %s26, 1
      %p189 = por %p187, %p188
      %p190 = scmp.ne.s32.totalorder %s181, %s182
      %p191 = scmp.eq.s32.totalorder %s26, 0
      %p192 = por %p190, %p191
      %p193 = scmp.ne.s32.totalorder %s181, %s182
      %p194 = scmp.eq.s32.totalorder %s27, 1
      %p195 = por %p193, %p194
      %p197 = scmp.ne.s32.totalorder %s182, %s196
      %p198 = scmp.eq.s32.totalorder %s27, 0
      %p199 = por %p197, %p198
      %s200 = ssub.s32 %s28, %s47
      %s201 = ssub.s32 %s29, %s43
      %s202 = sor.u32 %s200, %s201
      %p203 = scmp.eq.s32.totalorder %s202, 0
      %s205 = sadd.s32 %s204, 1
      %s206 = scalar_select %p203, %s204, %s205
      %p209 = pneg %p203
      %p210 = scmp.eq.s32.totalorder %s21, 1
      %p211 = por %p209, %p210
      %p212 = scmp.ne.s32.totalorder %s204, %s207
      %p213 = scmp.eq.s32.totalorder %s21, 0
      %p214 = por %p212, %p213
      %p215 = scmp.ne.s32.totalorder %s204, %s207
      %p216 = scmp.eq.s32.totalorder %s26, 1
      %p217 = por %p215, %p216
      %p218 = scmp.ne.s32.totalorder %s207, %s208
      %p219 = scmp.eq.s32.totalorder %s26, 0
      %p220 = por %p218, %p219
      %p221 = scmp.ne.s32.totalorder %s207, %s208
      %p222 = scmp.eq.s32.totalorder %s27, 1
      %p223 = por %p221, %p222
      %p225 = scmp.ne.s32.totalorder %s208, %s224
      %p226 = scmp.eq.s32.totalorder %s27, 0
      %p227 = por %p225, %p226
      %p228 = scmp.le.s32.totalorder 1, %s21
      %p229 = scmp.lt.s32.totalorder %s21, 3
      %p230 = pnand %p228, %p229
      %p231 = pneg %p230
      // Predicated region
      $region9: #{tpu_custom_call.1} parent=5 // pred_check
        _
      $region10: #{tpu_custom_call.1} parent=5 // pred_check_branch
        %233 = sbr.rel (%p230) target = $region12
      $region11: #{tpu_custom_call.1} parent=5 // pred_region
        %s234 = ssub.s32 %s21, 1
        // Predicated region
        $region13: #{tpu_custom_call.1} parent=11 // pred_check
          %p235 = pneg %p87
        $region14: #{tpu_custom_call.1} parent=11 // pred_check_branch
          %237 = sbr.rel (%p235) target = $region16
        $region15: #{tpu_custom_call.1} parent=11 // pred_region
          %s239 = ssub.s32 256, 256
          %240 = vsyncadd [#allocation9], %s239
          %s241 = sshll.u32 [#allocation8], 4
          %s242 = int_to_ptr.vmem [resolvable:$true] %s241
          %247 = dma.hbm_to_vmem [thread:$0]  %s1, 256, %s242, [#allocation9], 64, 64, 4
        $region16: #{tpu_custom_call.1} parent=11 // pred_fallthru
          _
        // Predicated region
        $region17: #{tpu_custom_call.1} parent=11 // pred_check
          %p248 = pneg %p108
        $region18: #{tpu_custom_call.1} parent=11 // pred_check_branch
          %250 = sbr.rel (%p248) target = $region20
        $region19: #{tpu_custom_call.1} parent=11 // pred_region
          _
        $region20: #{tpu_custom_call.1} parent=11 // pred_fallthru
          _
        // Predicated region
        $region21: #{tpu_custom_call.1} parent=11 // pred_check
          %p251 = pneg %p129
        $region22: #{tpu_custom_call.1} parent=11 // pred_check_branch
          %253 = sbr.rel (%p251) target = $region24
        $region23: #{tpu_custom_call.1} parent=11 // pred_region
          %s255 = ssub.s32 256, 256
          %256 = vsyncadd [#allocation9], %s255
          %s257 = sshll.u32 [#allocation10], 4
          %s258 = int_to_ptr.vmem [resolvable:$true] %s257
          %263 = dma.hbm_to_vmem [thread:$0]  %s3, 256, %s258, [#allocation9], 64, 64, 4
        $region24: #{tpu_custom_call.1} parent=11 // pred_fallthru
          _
        // Predicated region
        $region25: #{tpu_custom_call.1} parent=11 // pred_check
          %p264 = pneg %p150
        $region26: #{tpu_custom_call.1} parent=11 // pred_check_branch
          %266 = sbr.rel (%p264) target = $region28
        $region27: #{tpu_custom_call.1} parent=11 // pred_region
          _
        $region28: #{tpu_custom_call.1} parent=11 // pred_fallthru
          _
        // Predicated region
        $region29: #{tpu_custom_call.1} parent=11 // pred_check
          %p267 = pneg %p171
        $region30: #{tpu_custom_call.1} parent=11 // pred_check_branch
          %269 = sbr.rel (%p267) target = $region32
        $region31: #{tpu_custom_call.1} parent=11 // pred_region
          %s271 = ssub.s32 256, 256
          %272 = vsyncadd [#allocation12], %s271
          %s273 = sshll.u32 [#allocation11], 4
          %s274 = int_to_ptr.vmem [resolvable:$true] %s273
          %279 = dma.hbm_to_vmem [thread:$0]  %s5, 256, %s274, [#allocation12], 64, 64, 4
        $region32: #{tpu_custom_call.1} parent=11 // pred_fallthru
          _
        // Predicated region
        $region33: #{tpu_custom_call.1} parent=11 // pred_check
          %p280 = pneg %p192
        $region34: #{tpu_custom_call.1} parent=11 // pred_check_branch
          %282 = sbr.rel (%p280) target = $region36
        $region35: #{tpu_custom_call.1} parent=11 // pred_region
          _
        $region36: #{tpu_custom_call.1} parent=11 // pred_fallthru
          _
      $region12: #{tpu_custom_call.1} parent=5 // pred_fallthru
        _
      %p283 = scmp.lt.s32.totalorder %s21, 2
      // Predicated region
      $region37: #{tpu_custom_call.1} parent=5 // pred_check
        %p284 = pneg %p283
      $region38: #{tpu_custom_call.1} parent=5 // pred_check_branch
        %286 = sbr.rel (%p284) target = $region40
      $region39: #{tpu_custom_call.1} parent=5 // pred_region
        // Predicated region
        $region41: #{tpu_custom_call.1} parent=39 // pred_check
          %p287 = pneg %p60
        $region42: #{tpu_custom_call.1} parent=39 // pred_check_branch
          %289 = sbr.rel (%p287) target = $region44
        $region43: #{tpu_custom_call.1} parent=39 // pred_region
          %s290 = sand.u32 %s50, 1
          %s291 = scalar_lea.sflag [#allocation6], %s290
          %s292 = sand.u32 %s50, 1
          %s293 = smul.addr %s292, 4
          %s294 = scalar_lea.vmem [#allocation5], %s293
          %s296 = ssub.s32 64, 64
          %297 = vsyncadd %s291, %s296
          %s298 = smul.addr %s28, 64
          %s299 = scalar_lea.hbm %s0, %s298
          %s301 = sshll.u32 %s294, 4
          %s302 = int_to_ptr.vmem [resolvable:$true] %s301
          %304 = dma.hbm_to_vmem [thread:$0]  %s299, 64, %s302, %s291
        $region44: #{tpu_custom_call.1} parent=39 // pred_fallthru
          _
      $region40: #{tpu_custom_call.1} parent=5 // pred_fallthru
        _
      %p305 = scmp.le.s32.totalorder 1, %s21
      %p306 = scmp.lt.s32.totalorder %s21, 3
      %p307 = pnand %p305, %p306
      %p308 = pneg %p307
      // Predicated region
      $region45: #{tpu_custom_call.1} parent=5 // pred_check
        _
      $region46: #{tpu_custom_call.1} parent=5 // pred_check_branch
        %310 = sbr.rel (%p307) target = $region48
      $region47: #{tpu_custom_call.1} parent=5 // pred_region
        %s311 = ssub.s32 %s21, 1
        %s312 = sand.u32 %s53, 1
        %s313 = scalar_lea.sflag [#allocation6], %s312
        %s314 = sand.u32 %s53, 1
        %s315 = smul.addr %s314, 4
        %s316 = scalar_lea.vmem [#allocation5], %s315
        // Predicated region
        $region49: #{tpu_custom_call.1} parent=47 // pred_check
          %p317 = pneg %p66
        $region50: #{tpu_custom_call.1} parent=47 // pred_check_branch
          %319 = sbr.rel (%p317) target = $region52
        $region51: #{tpu_custom_call.1} parent=47 // pred_region
          %320 = dma.done %s313, 64
        $region52: #{tpu_custom_call.1} parent=47 // pred_fallthru
          _
        // Predicated region
        $region53: #{tpu_custom_call.1} parent=47 // pred_check
          %p321 = pneg %p87
        $region54: #{tpu_custom_call.1} parent=47 // pred_check_branch
          %323 = sbr.rel (%p321) target = $region56
        $region55: #{tpu_custom_call.1} parent=47 // pred_region
          %324 = dma.done [#allocation9], 256
        $region56: #{tpu_custom_call.1} parent=47 // pred_fallthru
          _
        // Predicated region
        $region57: #{tpu_custom_call.1} parent=47 // pred_check
          %p325 = pneg %p129
        $region58: #{tpu_custom_call.1} parent=47 // pred_check_branch
          %327 = sbr.rel (%p325) target = $region60
        $region59: #{tpu_custom_call.1} parent=47 // pred_region
          %328 = dma.done [#allocation9], 256
        $region60: #{tpu_custom_call.1} parent=47 // pred_fallthru
          _
        // Predicated region
        $region61: #{tpu_custom_call.1} parent=47 // pred_check
          %p329 = pneg %p171
        $region62: #{tpu_custom_call.1} parent=47 // pred_check_branch
          %331 = sbr.rel (%p329) target = $region64
        $region63: #{tpu_custom_call.1} parent=47 // pred_region
          %332 = dma.done [#allocation12], 256
        $region64: #{tpu_custom_call.1} parent=47 // pred_fallthru
          _
        %s333 = sand.u32 %s53, 1
        %s334 = scalar_lea.sflag [#allocation6], %s333
        %s335 = sand.u32 %s53, 1
        %s336 = smul.addr %s335, 4
        %s337 = scalar_lea.vmem [#allocation5], %s336
        %p338 = pneg %p66
        %p339 = pneg %p63
        %p340 = pneg %p87
        %p341 = pneg %p84
        %p342 = pneg %p108
        %p343 = pneg %p105
        %p344 = pneg %p129
        %p345 = pneg %p126
        %p346 = pneg %p150
        %p347 = pneg %p147
        %p348 = pneg %p171
        %p349 = pneg %p168
        %p350 = pneg %p192
        %p351 = pneg %p189
        %p352 = pneg %p220
        %p353 = pneg %p217
        %s354 = sand.u32 %s207, 1
        %s355 = scalar_lea.sflag [#allocation7], %s354
        %s356 = sand.u32 %s207, 1
        %s357 = smul.addr %s356, 8
        %s358 = scalar_lea.vmem [#allocation13], %s357
        %p360 = scmp.eq.s32.totalorder %s32, 0
        // Predicated region
        $region65: #{tpu_custom_call.1} parent=47 // pred_check
          %p361 = pneg %p360
        $region66: #{tpu_custom_call.1} parent=47 // pred_check_branch
          %363 = sbr.rel (%p361) target = $region68
        $region67: #{tpu_custom_call.1} parent=47 // pred_region
          %v364 = vld [vmem:[%s316] sm:$0xf]
          %s365 = smul.u32 %s33, 4
          %s366 = smul.addr %s365, 4
          %s367 = scalar_lea.vmem [#allocation10], %s366
          %v368 = vld [vmem:[%s367] sm:$0xf]
          %v369 = vld [vmem:[%s367 + $0x4] sm:$0xf]
          %v370 = vld [vmem:[%s367 + $0x8] sm:$0xf]
          %v371 = vld [vmem:[%s367 + $0xc] sm:$0xf]
          %s372 = scalar_lea.vmem %s4, %s33
          %v373 = vld [vmem:[%s372] sm:$0x1]
          %v375 = vlaneseq
          %v376 = vshrl.u32 %v375, 7
          %v377 = vsub.s32 0, %v376
          %v378 = vrot.slane %v373, %v377
          %v384 = vunpack.c.l.b16 %v368
          %v385 = vunpack.c.l.b16 %v369
          %v386 = vunpack.c.l.b16 %v370
          %v387 = vunpack.c.l.b16 %v371
          %v388 = vpack.c.b16 %v385, %v384
          %v389 = vpack.c.b16 %v387, %v386
          %vm392 = vcmask 261120
          %v394 = vsel %vm392, %v364, 0
          %396 = vmatprep.subr.bf16.mxu0 0
          %397 = vmatpush1.bf16.msra.mxu0 0
          %398 = vmatprep.subr.bf16.mxu0 0
          %399 = vmatpush1.bf16.msra.mxu0 0
          %400 = vmatprep.subr.bf16.mxu0 0
          %401 = vmatpush1.bf16.msra.mxu0 0
          %402 = vmatprep.subr.bf16.mxu0 0
          %403 = vmatpush1.bf16.msra.mxu0 0
          %404 = vmatprep.subr.bf16.mxu0 0
          %405 = vmatpush1.bf16.msra.mxu0 0
          %406 = vmatprep.subr.bf16.mxu0 0
          %407 = vmatpush1.bf16.msra.mxu0 0
          %408 = vmatprep.subr.bf16.mxu0 0
          %409 = vmatpush1.bf16.msra.mxu0 %v389
          %410 = vmatprep.subr.bf16.mxu0 0
          %411 = vmatpush1.bf16.msra.mxu0 %v388
          %412 = vmatprep.subr.bf16.mxu0 0
          %413 = vmatpush2.bf16.msra.mxu0 0
          %414 = vmatprep.subr.bf16.mxu0 0
          %415 = vmatpush2.bf16.msra.mxu0 0
          %416 = vmatprep.subr.bf16.mxu0 0
          %417 = vmatpush2.bf16.msra.mxu0 0
          %418 = vmatprep.subr.bf16.mxu0 0
          %419 = vmatpush2.bf16.msra.mxu0 0
          %420 = vmatprep.subr.bf16.mxu0 0
          %421 = vmatpush2.bf16.msra.mxu0 0
          %422 = vmatprep.subr.bf16.mxu0 0
          %423 = vmatpush2.bf16.msra.mxu0 0
          %424 = vmatprep.subr.bf16.mxu0 0
          %425 = vmatpush2.bf16.msra.mxu0 0
          %426 = vmatprep.subr.bf16.mxu0 0
          %427 = vmatpush2.bf16.msra.mxu0 0
          %428 = vmatprep.mubr.bf16.mxu0 0
          %429 = vmatmul.mubr.bf16.gmra.mxu0 %v394
          %v430 = vpop.f32.mrf.mxu0
          %v431 = vadd.f32 %v378, %v430
          %v432 = vpop.f32.mrf.mxu0
          %v433 = vpop.f32.mrf.mxu0
          %v434 = vpop.f32.mrf.mxu0
          %435 = vdwg.mxu0
          %v436 = vpack.c.bf16 %v431, %v431
          %437 = vxpose.xlu0.c.b16.start [1/8] %v436, 128
          %438 = vxpose.xlu0.c.b16.cont [2/8] 0, 128
          %439 = vxpose.xlu0.c.b16.cont [3/8] 0, 128
          %440 = vxpose.xlu0.c.b16.cont [4/8] 0, 128
          %441 = vxpose.xlu0.c.b16.cont [5/8] 0, 128
          %442 = vxpose.xlu0.c.b16.cont [6/8] 0, 128
          %443 = vxpose.xlu0.c.b16.cont [7/8] 0, 128
          %444 = vxpose.xlu0.c.b16.end [8/8] 0, 128
          %v445 = vpop.trf.xlu0
          %v446 = vpop.trf.xlu0
          %v447 = vpop.trf.xlu0
          %v448 = vpop.trf.xlu0
          %v449 = vpop.trf.xlu0
          %v450 = vpop.trf.xlu0
          %v451 = vpop.trf.xlu0
          %v452 = vpop.trf.xlu0
          %v455 = vunpack.c.l.b16 %v445
          %v456 = vunpack.c.h.b16 %v445
          %v457 = vunpack.c.l.b16 %v446
          %v458 = vunpack.c.h.b16 %v446
          %v459 = vpack.c.b16 %v455, %v455
          %v460 = vpack.c.b16 %v456, %v456
          %v461 = vpack.c.b16 %v457, %v457
          %v462 = vpack.c.b16 %v458, %v458
          %s467 = smul.addr %s365, 4
          %s468 = scalar_lea.vmem [#allocation2], %s467
          %vm469 = vcmask 60416
          %470 = vst.msk [vmem:[%s468] sm:$0xf] %vm469, %v459
          %471 = vst.msk [vmem:[%s468 + $0x4] sm:$0xf] %vm469, %v460
          %472 = vst.msk [vmem:[%s468 + $0x8] sm:$0xf] %vm469, %v461
          %473 = vst.msk [vmem:[%s468 + $0xc] sm:$0xf] %vm469, %v462
          %v475 = vunpack.c.l.b16 %v436
          %v476 = vpack.c.b16 %v475, %v475
          %477 = vrot.lane.b32.xlu0 %v476, 96
          %v478 = vpop.permute.xlu0 %477
          %s480 = smul.addr %s33, 4
          %s481 = scalar_lea.vmem [#allocation3], %s480
          %vm482 = vcmask 257024
          %483 = vst.msk [vmem:[%s481] sm:$0xf] %vm482, %v478
        $region68: #{tpu_custom_call.1} parent=47 // pred_fallthru
          _
        %p484 = scmp.eq.s32.totalorder %s33, 0
        // Predicated region
        $region69: #{tpu_custom_call.1} parent=47 // pred_check
          %p485 = pneg %p484
        $region70: #{tpu_custom_call.1} parent=47 // pred_check_branch
          %487 = sbr.rel (%p485) target = $region72
        $region71: #{tpu_custom_call.1} parent=47 // pred_region
          %v488 = vld [vmem:[%s6] sm:$0x1]
          %v490 = vlaneseq
          %v491 = vshrl.u32 %v490, 7
          %v492 = vsub.s32 0, %v491
          %v493 = vrot.slane %v488, %v492
          %vm495 = vcmask 261120
          %496 = vst.msk [vmem:[#allocation4] sm:$0xff] %vm495, %v493
        $region72: #{tpu_custom_call.1} parent=47 // pred_fallthru
          _
        %s497 = smul.u32 %s32, 8
        %s498 = sshra.s32 %s497, 3
        %s499 = sand.u32 %s497, 7
        %s500 = smul.addr %s498, 4
        %s501 = scalar_lea.vmem %s316, %s500 [#allocation5]
        %v502 = vld [vmem:[%s501] sm:$0xf]
        %s503 = smul.u32 %s33, 4
        %s504 = smul.addr %s503, 4
        %s505 = scalar_lea.vmem [#allocation8], %s504
        %v506 = vld [vmem:[%s505] sm:$0xf]
        %v507 = vld [vmem:[%s505 + $0x4] sm:$0xf]
        %v508 = vld [vmem:[%s505 + $0x8] sm:$0xf]
        %v509 = vld [vmem:[%s505 + $0xc] sm:$0xf]
        %s510 = scalar_lea.vmem %s2, %s33
        %v511 = vld [vmem:[%s510] sm:$0x1]
        %v513 = vlaneseq
        %v514 = vshrl.u32 %v513, 7
        %v515 = vsub.s32 0, %v514
        %v516 = vrot.slane %v511, %v515
        %v522 = vunpack.c.l.b16 %v506
        %v523 = vunpack.c.l.b16 %v507
        %v524 = vunpack.c.l.b16 %v508
        %v525 = vunpack.c.l.b16 %v509
        %v526 = vpack.c.b16 %v523, %v522
        %v527 = vpack.c.b16 %v525, %v524
        %vm530 = vcmask 261120
        %v532 = vsel %vm530, %v502, 0
        %534 = vmatprep.subr.bf16.mxu0 0
        %535 = vmatpush1.bf16.msra.mxu0 0
        %536 = vmatprep.subr.bf16.mxu0 0
        %537 = vmatpush1.bf16.msra.mxu0 0
        %538 = vmatprep.subr.bf16.mxu0 0
        %539 = vmatpush1.bf16.msra.mxu0 0
        %540 = vmatprep.subr.bf16.mxu0 0
        %541 = vmatpush1.bf16.msra.mxu0 0
        %542 = vmatprep.subr.bf16.mxu0 0
        %543 = vmatpush1.bf16.msra.mxu0 0
        %544 = vmatprep.subr.bf16.mxu0 0
        %545 = vmatpush1.bf16.msra.mxu0 0
        %546 = vmatprep.subr.bf16.mxu0 0
        %547 = vmatpush1.bf16.msra.mxu0 %v527
        %548 = vmatprep.subr.bf16.mxu0 0
        %549 = vmatpush1.bf16.msra.mxu0 %v526
        %550 = vmatprep.subr.bf16.mxu0 0
        %551 = vmatpush2.bf16.msra.mxu0 0
        %552 = vmatprep.subr.bf16.mxu0 0
        %553 = vmatpush2.bf16.msra.mxu0 0
        %554 = vmatprep.subr.bf16.mxu0 0
        %555 = vmatpush2.bf16.msra.mxu0 0
        %556 = vmatprep.subr.bf16.mxu0 0
        %557 = vmatpush2.bf16.msra.mxu0 0
        %558 = vmatprep.subr.bf16.mxu0 0
        %559 = vmatpush2.bf16.msra.mxu0 0
        %560 = vmatprep.subr.bf16.mxu0 0
        %561 = vmatpush2.bf16.msra.mxu0 0
        %562 = vmatprep.subr.bf16.mxu0 0
        %563 = vmatpush2.bf16.msra.mxu0 0
        %564 = vmatprep.subr.bf16.mxu0 0
        %565 = vmatpush2.bf16.msra.mxu0 0
        %566 = vmatprep.mubr.bf16.mxu0 0
        %567 = vmatmul.mubr.bf16.gmra.mxu0 %v532
        %v568 = vpop.f32.mrf.mxu0
        %v569 = vadd.f32 %v516, %v568
        %v570 = vpop.f32.mrf.mxu0
        %v571 = vpop.f32.mrf.mxu0
        %v572 = vpop.f32.mrf.mxu0
        %573 = vdwg.mxu0
        %v574 = vmul.f32 %v569, 0.35355338
        %v575 = vpack.c.bf16 %v574, %v574
        %s576 = smul.addr %s503, 4
        %s577 = scalar_lea.vmem [#allocation2], %s576
        %v578 = vld [vmem:[%s577] sm:$0xf]
        %v579 = vld [vmem:[%s577 + $0x4] sm:$0xf]
        %v580 = vld [vmem:[%s577 + $0x8] sm:$0xf]
        %v581 = vld [vmem:[%s577 + $0xc] sm:$0xf]
        %s582 = smul.addr %s33, 4
        %s583 = scalar_lea.vmem [#allocation3], %s582
        %v584 = vld [vmem:[%s583] sm:$0xf]
        %vm585 = vcmask 64512
        %v587 = vsel %vm585, %v575, 0
        %vm589 = vcmask 1043456
        %v591 = vsel %vm589, %v578, 0
        %593 = vmatprep.subr.bf16.mxu0 0
        %594 = vmatpush1.bf16.msra.mxu0 0
        %595 = vmatprep.subr.bf16.mxu0 0
        %596 = vmatpush1.bf16.msra.mxu0 0
        %597 = vmatprep.subr.bf16.mxu0 0
        %598 = vmatpush1.bf16.msra.mxu0 0
        %599 = vmatprep.subr.bf16.mxu0 0
        %600 = vmatpush1.bf16.msra.mxu0 0
        %601 = vmatprep.subr.bf16.mxu0 0
        %602 = vmatpush1.bf16.msra.mxu0 0
        %603 = vmatprep.subr.bf16.mxu0 0
        %604 = vmatpush1.bf16.msra.mxu0 0
        %605 = vmatprep.subr.bf16.mxu0 0
        %606 = vmatpush1.bf16.msra.mxu0 0
        %607 = vmatprep.subr.bf16.mxu0 0
        %608 = vmatpush1.bf16.msra.mxu0 %v591
        %609 = vmatprep.subr.bf16.mxu0 0
        %610 = vmatpush2.bf16.msra.mxu0 0
        %611 = vmatprep.subr.bf16.mxu0 0
        %612 = vmatpush2.bf16.msra.mxu0 0
        %613 = vmatprep.subr.bf16.mxu0 0
        %614 = vmatpush2.bf16.msra.mxu0 0
        %615 = vmatprep.subr.bf16.mxu0 0
        %616 = vmatpush2.bf16.msra.mxu0 0
        %617 = vmatprep.subr.bf16.mxu0 0
        %618 = vmatpush2.bf16.msra.mxu0 0
        %619 = vmatprep.subr.bf16.mxu0 0
        %620 = vmatpush2.bf16.msra.mxu0 0
        %621 = vmatprep.subr.bf16.mxu0 0
        %622 = vmatpush2.bf16.msra.mxu0 0
        %623 = vmatprep.subr.bf16.mxu0 0
        %624 = vmatpush2.bf16.msra.mxu0 0
        %625 = vmatprep.mubr.bf16.mxu0 0
        %626 = vmatmul.mubr.bf16.gmra.mxu0 %v587
        %v627 = vpop.f32.mrf.mxu0
        %v628 = vadd.f32 0.0, %v627
        %v629 = vpop.f32.mrf.mxu0
        %v630 = vpop.f32.mrf.mxu0
        %v631 = vpop.f32.mrf.mxu0
        %632 = vdwg.mxu0
        %v633 = vsel %vm585, %v628, -inf
        %634 = vmax.xlane.f32.xlu0 %v633
        %v635 = vpop.xlane.xlu0 %634
        %v636 = vsub.f32 %v628, %v635
        %v637 = vpack.c.bf16 %v636, %v636
        %v639 = vmul.bf16 %v637, 1069105081
        %v640 = vpow.bf16.pop %v639
        %v641 = vunpack.c.l.bf16 %v640
        %v642 = vsel %vm585, %v641, 0.0
        %643 = vadd.xlane.f32.xlu0 %v642
        %v644 = vpop.xlane.xlu0 %643
        %v646 = vsel %vm585, %v640, 0
        %v649 = vsel %vm589, %v584, 0
        %651 = vmatprep.subr.bf16.mxu0 0
        %652 = vmatpush1.bf16.msra.mxu0 0
        %653 = vmatprep.subr.bf16.mxu0 0
        %654 = vmatpush1.bf16.msra.mxu0 0
        %655 = vmatprep.subr.bf16.mxu0 0
        %656 = vmatpush1.bf16.msra.mxu0 0
        %657 = vmatprep.subr.bf16.mxu0 0
        %658 = vmatpush1.bf16.msra.mxu0 0
        %659 = vmatprep.subr.bf16.mxu0 0
        %660 = vmatpush1.bf16.msra.mxu0 0
        %661 = vmatprep.subr.bf16.mxu0 0
        %662 = vmatpush1.bf16.msra.mxu0 0
        %663 = vmatprep.subr.bf16.mxu0 0
        %664 = vmatpush1.bf16.msra.mxu0 0
        %665 = vmatprep.subr.bf16.mxu0 0
        %666 = vmatpush1.bf16.msra.mxu0 %v649
        %667 = vmatprep.subr.bf16.mxu0 0
        %668 = vmatpush2.bf16.msra.mxu0 0
        %669 = vmatprep.subr.bf16.mxu0 0
        %670 = vmatpush2.bf16.msra.mxu0 0
        %671 = vmatprep.subr.bf16.mxu0 0
        %672 = vmatpush2.bf16.msra.mxu0 0
        %673 = vmatprep.subr.bf16.mxu0 0
        %674 = vmatpush2.bf16.msra.mxu0 0
        %675 = vmatprep.subr.bf16.mxu0 0
        %676 = vmatpush2.bf16.msra.mxu0 0
        %677 = vmatprep.subr.bf16.mxu0 0
        %678 = vmatpush2.bf16.msra.mxu0 0
        %679 = vmatprep.subr.bf16.mxu0 0
        %680 = vmatpush2.bf16.msra.mxu0 0
        %681 = vmatprep.subr.bf16.mxu0 0
        %682 = vmatpush2.bf16.msra.mxu0 0
        %683 = vmatprep.mubr.bf16.mxu0 0
        %684 = vmatmul.mubr.bf16.gmra.mxu0 %v646
        %v685 = vpop.f32.mrf.mxu0
        %v686 = vadd.f32 0.0, %v685
        %v687 = vpop.f32.mrf.mxu0
        %v688 = vpop.f32.mrf.mxu0
        %v689 = vpop.f32.mrf.mxu0
        %690 = vdwg.mxu0
        %v691 = vrcp.pop %v644
        %v692 = vmul.f32 %v686, %v691
        %v693 = vpack.c.bf16 %v692, %v692
        %695 = vrot.lane.b32.xlu0 %v575, 120
        %v696 = vpop.permute.xlu0 %695
        %v698 = vsel %vm585, %v696, 0
        %v701 = vsel %vm589, %v579, 0
        %703 = vmatprep.subr.bf16.mxu0 0
        %704 = vmatpush1.bf16.msra.mxu0 0
        %705 = vmatprep.subr.bf16.mxu0 0
        %706 = vmatpush1.bf16.msra.mxu0 0
        %707 = vmatprep.subr.bf16.mxu0 0
        %708 = vmatpush1.bf16.msra.mxu0 0
        %709 = vmatprep.subr.bf16.mxu0 0
        %710 = vmatpush1.bf16.msra.mxu0 0
        %711 = vmatprep.subr.bf16.mxu0 0
        %712 = vmatpush1.bf16.msra.mxu0 0
        %713 = vmatprep.subr.bf16.mxu0 0
        %714 = vmatpush1.bf16.msra.mxu0 0
        %715 = vmatprep.subr.bf16.mxu0 0
        %716 = vmatpush1.bf16.msra.mxu0 0
        %717 = vmatprep.subr.bf16.mxu0 0
        %718 = vmatpush1.bf16.msra.mxu0 %v701
        %719 = vmatprep.subr.bf16.mxu0 0
        %720 = vmatpush2.bf16.msra.mxu0 0
        %721 = vmatprep.subr.bf16.mxu0 0
        %722 = vmatpush2.bf16.msra.mxu0 0
        %723 = vmatprep.subr.bf16.mxu0 0
        %724 = vmatpush2.bf16.msra.mxu0 0
        %725 = vmatprep.subr.bf16.mxu0 0
        %726 = vmatpush2.bf16.msra.mxu0 0
        %727 = vmatprep.subr.bf16.mxu0 0
        %728 = vmatpush2.bf16.msra.mxu0 0
        %729 = vmatprep.subr.bf16.mxu0 0
        %730 = vmatpush2.bf16.msra.mxu0 0
        %731 = vmatprep.subr.bf16.mxu0 0
        %732 = vmatpush2.bf16.msra.mxu0 0
        %733 = vmatprep.subr.bf16.mxu0 0
        %734 = vmatpush2.bf16.msra.mxu0 0
        %735 = vmatprep.mubr.bf16.mxu0 0
        %736 = vmatmul.mubr.bf16.gmra.mxu0 %v698
        %v737 = vpop.f32.mrf.mxu0
        %v738 = vadd.f32 0.0, %v737
        %v739 = vpop.f32.mrf.mxu0
        %v740 = vpop.f32.mrf.mxu0
        %v741 = vpop.f32.mrf.mxu0
        %742 = vdwg.mxu0
        %v743 = vsel %vm585, %v738, -inf
        %744 = vmax.xlane.f32.xlu0 %v743
        %v745 = vpop.xlane.xlu0 %744
        %v746 = vsub.f32 %v738, %v745
        %v747 = vpack.c.bf16 %v746, %v746
        %v749 = vmul.bf16 %v747, 1069105081
        %v750 = vpow.bf16.pop %v749
        %v751 = vunpack.c.l.bf16 %v750
        %v752 = vsel %vm585, %v751, 0.0
        %753 = vadd.xlane.f32.xlu0 %v752
        %v754 = vpop.xlane.xlu0 %753
        %v756 = vunpack.c.l.b16 %v584
        %v757 = vpack.c.b16 %v756, %v756
        %758 = vrot.lane.b32.xlu0 %v757, 120
        %v759 = vpop.permute.xlu0 %758
        %v761 = vsel %vm585, %v750, 0
        %v764 = vsel %vm589, %v759, 0
        %766 = vmatprep.subr.bf16.mxu0 0
        %767 = vmatpush1.bf16.msra.mxu0 0
        %768 = vmatprep.subr.bf16.mxu0 0
        %769 = vmatpush1.bf16.msra.mxu0 0
        %770 = vmatprep.subr.bf16.mxu0 0
        %771 = vmatpush1.bf16.msra.mxu0 0
        %772 = vmatprep.subr.bf16.mxu0 0
        %773 = vmatpush1.bf16.msra.mxu0 0
        %774 = vmatprep.subr.bf16.mxu0 0
        %775 = vmatpush1.bf16.msra.mxu0 0
        %776 = vmatprep.subr.bf16.mxu0 0
        %777 = vmatpush1.bf16.msra.mxu0 0
        %778 = vmatprep.subr.bf16.mxu0 0
        %779 = vmatpush1.bf16.msra.mxu0 0
        %780 = vmatprep.subr.bf16.mxu0 0
        %781 = vmatpush1.bf16.msra.mxu0 %v764
        %782 = vmatprep.subr.bf16.mxu0 0
        %783 = vmatpush2.bf16.msra.mxu0 0
        %784 = vmatprep.subr.bf16.mxu0 0
        %785 = vmatpush2.bf16.msra.mxu0 0
        %786 = vmatprep.subr.bf16.mxu0 0
        %787 = vmatpush2.bf16.msra.mxu0 0
        %788 = vmatprep.subr.bf16.mxu0 0
        %789 = vmatpush2.bf16.msra.mxu0 0
        %790 = vmatprep.subr.bf16.mxu0 0
        %791 = vmatpush2.bf16.msra.mxu0 0
        %792 = vmatprep.subr.bf16.mxu0 0
        %793 = vmatpush2.bf16.msra.mxu0 0
        %794 = vmatprep.subr.bf16.mxu0 0
        %795 = vmatpush2.bf16.msra.mxu0 0
        %796 = vmatprep.subr.bf16.mxu0 0
        %797 = vmatpush2.bf16.msra.mxu0 0
        %798 = vmatprep.mubr.bf16.mxu0 0
        %799 = vmatmul.mubr.bf16.gmra.mxu0 %v761
        %v800 = vpop.f32.mrf.mxu0
        %v801 = vadd.f32 0.0, %v800
        %v802 = vpop.f32.mrf.mxu0
        %v803 = vpop.f32.mrf.mxu0
        %v804 = vpop.f32.mrf.mxu0
        %805 = vdwg.mxu0
        %v806 = vrcp.pop %v754
        %v807 = vmul.f32 %v801, %v806
        %v808 = vpack.c.bf16 %v807, %v807
        %809 = vrot.lane.b32.xlu0 %v575, 112
        %v810 = vpop.permute.xlu0 %809
        %v812 = vsel %vm585, %v810, 0
        %v815 = vsel %vm589, %v580, 0
        %817 = vmatprep.subr.bf16.mxu0 0
        %818 = vmatpush1.bf16.msra.mxu0 0
        %819 = vmatprep.subr.bf16.mxu0 0
        %820 = vmatpush1.bf16.msra.mxu0 0
        %821 = vmatprep.subr.bf16.mxu0 0
        %822 = vmatpush1.bf16.msra.mxu0 0
        %823 = vmatprep.subr.bf16.mxu0 0
        %824 = vmatpush1.bf16.msra.mxu0 0
        %825 = vmatprep.subr.bf16.mxu0 0
        %826 = vmatpush1.bf16.msra.mxu0 0
        %827 = vmatprep.subr.bf16.mxu0 0
        %828 = vmatpush1.bf16.msra.mxu0 0
        %829 = vmatprep.subr.bf16.mxu0 0
        %830 = vmatpush1.bf16.msra.mxu0 0
        %831 = vmatprep.subr.bf16.mxu0 0
        %832 = vmatpush1.bf16.msra.mxu0 %v815
        %833 = vmatprep.subr.bf16.mxu0 0
        %834 = vmatpush2.bf16.msra.mxu0 0
        %835 = vmatprep.subr.bf16.mxu0 0
        %836 = vmatpush2.bf16.msra.mxu0 0
        %837 = vmatprep.subr.bf16.mxu0 0
        %838 = vmatpush2.bf16.msra.mxu0 0
        %839 = vmatprep.subr.bf16.mxu0 0
        %840 = vmatpush2.bf16.msra.mxu0 0
        %841 = vmatprep.subr.bf16.mxu0 0
        %842 = vmatpush2.bf16.msra.mxu0 0
        %843 = vmatprep.subr.bf16.mxu0 0
        %844 = vmatpush2.bf16.msra.mxu0 0
        %845 = vmatprep.subr.bf16.mxu0 0
        %846 = vmatpush2.bf16.msra.mxu0 0
        %847 = vmatprep.subr.bf16.mxu0 0
        %848 = vmatpush2.bf16.msra.mxu0 0
        %849 = vmatprep.mubr.bf16.mxu0 0
        %850 = vmatmul.mubr.bf16.gmra.mxu0 %v812
        %v851 = vpop.f32.mrf.mxu0
        %v852 = vadd.f32 0.0, %v851
        %v853 = vpop.f32.mrf.mxu0
        %v854 = vpop.f32.mrf.mxu0
        %v855 = vpop.f32.mrf.mxu0
        %856 = vdwg.mxu0
        %v857 = vsel %vm585, %v852, -inf
        %858 = vmax.xlane.f32.xlu0 %v857
        %v859 = vpop.xlane.xlu0 %858
        %v860 = vsub.f32 %v852, %v859
        %v861 = vpack.c.bf16 %v860, %v860
        %v863 = vmul.bf16 %v861, 1069105081
        %v864 = vpow.bf16.pop %v863
        %v865 = vunpack.c.l.bf16 %v864
        %v866 = vsel %vm585, %v865, 0.0
        %867 = vadd.xlane.f32.xlu0 %v866
        %v868 = vpop.xlane.xlu0 %867
        %869 = vrot.lane.b32.xlu0 %v757, 112
        %v870 = vpop.permute.xlu0 %869
        %v872 = vsel %vm585, %v864, 0
        %v875 = vsel %vm589, %v870, 0
        %877 = vmatprep.subr.bf16.mxu0 0
        %878 = vmatpush1.bf16.msra.mxu0 0
        %879 = vmatprep.subr.bf16.mxu0 0
        %880 = vmatpush1.bf16.msra.mxu0 0
        %881 = vmatprep.subr.bf16.mxu0 0
        %882 = vmatpush1.bf16.msra.mxu0 0
        %883 = vmatprep.subr.bf16.mxu0 0
        %884 = vmatpush1.bf16.msra.mxu0 0
        %885 = vmatprep.subr.bf16.mxu0 0
        %886 = vmatpush1.bf16.msra.mxu0 0
        %887 = vmatprep.subr.bf16.mxu0 0
        %888 = vmatpush1.bf16.msra.mxu0 0
        %889 = vmatprep.subr.bf16.mxu0 0
        %890 = vmatpush1.bf16.msra.mxu0 0
        %891 = vmatprep.subr.bf16.mxu0 0
        %892 = vmatpush1.bf16.msra.mxu0 %v875
        %893 = vmatprep.subr.bf16.mxu0 0
        %894 = vmatpush2.bf16.msra.mxu0 0
        %895 = vmatprep.subr.bf16.mxu0 0
        %896 = vmatpush2.bf16.msra.mxu0 0
        %897 = vmatprep.subr.bf16.mxu0 0
        %898 = vmatpush2.bf16.msra.mxu0 0
        %899 = vmatprep.subr.bf16.mxu0 0
        %900 = vmatpush2.bf16.msra.mxu0 0
        %901 = vmatprep.subr.bf16.mxu0 0
        %902 = vmatpush2.bf16.msra.mxu0 0
        %903 = vmatprep.subr.bf16.mxu0 0
        %904 = vmatpush2.bf16.msra.mxu0 0
        %905 = vmatprep.subr.bf16.mxu0 0
        %906 = vmatpush2.bf16.msra.mxu0 0
        %907 = vmatprep.subr.bf16.mxu0 0
        %908 = vmatpush2.bf16.msra.mxu0 0
        %909 = vmatprep.mubr.bf16.mxu0 0
        %910 = vmatmul.mubr.bf16.gmra.mxu0 %v872
        %v911 = vpop.f32.mrf.mxu0
        %v912 = vadd.f32 0.0, %v911
        %v913 = vpop.f32.mrf.mxu0
        %v914 = vpop.f32.mrf.mxu0
        %v915 = vpop.f32.mrf.mxu0
        %916 = vdwg.mxu0
        %v917 = vrcp.pop %v868
        %v918 = vmul.f32 %v912, %v917
        %v919 = vpack.c.bf16 %v918, %v918
        %920 = vrot.lane.b32.xlu0 %v575, 104
        %v921 = vpop.permute.xlu0 %920
        %v923 = vsel %vm585, %v921, 0
        %v926 = vsel %vm589, %v581, 0
        %928 = vmatprep.subr.bf16.mxu0 0
        %929 = vmatpush1.bf16.msra.mxu0 0
        %930 = vmatprep.subr.bf16.mxu0 0
        %931 = vmatpush1.bf16.msra.mxu0 0
        %932 = vmatprep.subr.bf16.mxu0 0
        %933 = vmatpush1.bf16.msra.mxu0 0
        %934 = vmatprep.subr.bf16.mxu0 0
        %935 = vmatpush1.bf16.msra.mxu0 0
        %936 = vmatprep.subr.bf16.mxu0 0
        %937 = vmatpush1.bf16.msra.mxu0 0
        %938 = vmatprep.subr.bf16.mxu0 0
        %939 = vmatpush1.bf16.msra.mxu0 0
        %940 = vmatprep.subr.bf16.mxu0 0
        %941 = vmatpush1.bf16.msra.mxu0 0
        %942 = vmatprep.subr.bf16.mxu0 0
        %943 = vmatpush1.bf16.msra.mxu0 %v926
        %944 = vmatprep.subr.bf16.mxu0 0
        %945 = vmatpush2.bf16.msra.mxu0 0
        %946 = vmatprep.subr.bf16.mxu0 0
        %947 = vmatpush2.bf16.msra.mxu0 0
        %948 = vmatprep.subr.bf16.mxu0 0
        %949 = vmatpush2.bf16.msra.mxu0 0
        %950 = vmatprep.subr.bf16.mxu0 0
        %951 = vmatpush2.bf16.msra.mxu0 0
        %952 = vmatprep.subr.bf16.mxu0 0
        %953 = vmatpush2.bf16.msra.mxu0 0
        %954 = vmatprep.subr.bf16.mxu0 0
        %955 = vmatpush2.bf16.msra.mxu0 0
        %956 = vmatprep.subr.bf16.mxu0 0
        %957 = vmatpush2.bf16.msra.mxu0 0
        %958 = vmatprep.subr.bf16.mxu0 0
        %959 = vmatpush2.bf16.msra.mxu0 0
        %960 = vmatprep.mubr.bf16.mxu0 0
        %961 = vmatmul.mubr.bf16.gmra.mxu0 %v923
        %v962 = vpop.f32.mrf.mxu0
        %v963 = vadd.f32 0.0, %v962
        %v964 = vpop.f32.mrf.mxu0
        %v965 = vpop.f32.mrf.mxu0
        %v966 = vpop.f32.mrf.mxu0
        %967 = vdwg.mxu0
        %v968 = vsel %vm585, %v963, -inf
        %969 = vmax.xlane.f32.xlu0 %v968
        %v970 = vpop.xlane.xlu0 %969
        %v971 = vsub.f32 %v963, %v970
        %v972 = vpack.c.bf16 %v971, %v971
        %v974 = vmul.bf16 %v972, 1069105081
        %v975 = vpow.bf16.pop %v974
        %v976 = vunpack.c.l.bf16 %v975
        %v977 = vsel %vm585, %v976, 0.0
        %978 = vadd.xlane.f32.xlu0 %v977
        %v979 = vpop.xlane.xlu0 %978
        %980 = vrot.lane.b32.xlu0 %v757, 104
        %v981 = vpop.permute.xlu0 %980
        %v983 = vsel %vm585, %v975, 0
        %v986 = vsel %vm589, %v981, 0
        %988 = vmatprep.subr.bf16.mxu0 0
        %989 = vmatpush1.bf16.msra.mxu0 0
        %990 = vmatprep.subr.bf16.mxu0 0
        %991 = vmatpush1.bf16.msra.mxu0 0
        %992 = vmatprep.subr.bf16.mxu0 0
        %993 = vmatpush1.bf16.msra.mxu0 0
        %994 = vmatprep.subr.bf16.mxu0 0
        %995 = vmatpush1.bf16.msra.mxu0 0
        %996 = vmatprep.subr.bf16.mxu0 0
        %997 = vmatpush1.bf16.msra.mxu0 0
        %998 = vmatprep.subr.bf16.mxu0 0
        %999 = vmatpush1.bf16.msra.mxu0 0
        %1000 = vmatprep.subr.bf16.mxu0 0
        %1001 = vmatpush1.bf16.msra.mxu0 0
        %1002 = vmatprep.subr.bf16.mxu0 0
        %1003 = vmatpush1.bf16.msra.mxu0 %v986
        %1004 = vmatprep.subr.bf16.mxu0 0
        %1005 = vmatpush2.bf16.msra.mxu0 0
        %1006 = vmatprep.subr.bf16.mxu0 0
        %1007 = vmatpush2.bf16.msra.mxu0 0
        %1008 = vmatprep.subr.bf16.mxu0 0
        %1009 = vmatpush2.bf16.msra.mxu0 0
        %1010 = vmatprep.subr.bf16.mxu0 0
        %1011 = vmatpush2.bf16.msra.mxu0 0
        %1012 = vmatprep.subr.bf16.mxu0 0
        %1013 = vmatpush2.bf16.msra.mxu0 0
        %1014 = vmatprep.subr.bf16.mxu0 0
        %1015 = vmatpush2.bf16.msra.mxu0 0
        %1016 = vmatprep.subr.bf16.mxu0 0
        %1017 = vmatpush2.bf16.msra.mxu0 0
        %1018 = vmatprep.subr.bf16.mxu0 0
        %1019 = vmatpush2.bf16.msra.mxu0 0
        %1020 = vmatprep.mubr.bf16.mxu0 0
        %1021 = vmatmul.mubr.bf16.gmra.mxu0 %v983
        %v1022 = vpop.f32.mrf.mxu0
        %v1023 = vadd.f32 0.0, %v1022
        %v1024 = vpop.f32.mrf.mxu0
        %v1025 = vpop.f32.mrf.mxu0
        %v1026 = vpop.f32.mrf.mxu0
        %1027 = vdwg.mxu0
        %v1028 = vrcp.pop %v979
        %v1029 = vmul.f32 %v1023, %v1028
        %v1030 = vpack.c.bf16 %v1029, %v1029
        %1032 = vrot.lane.b32.xlu0 %v808, 8
        %v1033 = vpop.permute.xlu0 %1032
        %1035 = vrot.lane.b32.xlu0 %v919, 16
        %v1036 = vpop.permute.xlu0 %1035
        %1038 = vrot.lane.b32.xlu0 %v1030, 24
        %v1039 = vpop.permute.xlu0 %1038
        %v1042 = vsel %vm585, %v693, %v1033
        %vm1043 = vcmask 130048
        %v1045 = vsel %vm1043, %v1042, %v1036
        %vm1046 = vcmask 195584
        %v1048 = vsel %vm1046, %v1045, %v1039
        %v1049 = vld [vmem:[#allocation4] sm:$0xff]
        %s1050 = smul.addr %s503, 4
        %s1051 = scalar_lea.vmem [#allocation11], %s1050
        %v1052 = vld [vmem:[%s1051] sm:$0xf]
        %v1053 = vld [vmem:[%s1051 + $0x4] sm:$0xf]
        %v1054 = vld [vmem:[%s1051 + $0x8] sm:$0xf]
        %v1055 = vld [vmem:[%s1051 + $0xc] sm:$0xf]
        %v1060 = vunpack.c.l.b16 %v1052
        %v1061 = vunpack.c.l.b16 %v1053
        %v1062 = vunpack.c.l.b16 %v1054
        %v1063 = vunpack.c.l.b16 %v1055
        %v1064 = vpack.c.b16 %v1061, %v1060
        %v1065 = vpack.c.b16 %v1063, %v1062
        %v1068 = vsel %vm530, %v1048, 0
        %1070 = vmatprep.subr.bf16.mxu0 0
        %1071 = vmatpush1.bf16.msra.mxu0 0
        %1072 = vmatprep.subr.bf16.mxu0 0
        %1073 = vmatpush1.bf16.msra.mxu0 0
        %1074 = vmatprep.subr.bf16.mxu0 0
        %1075 = vmatpush1.bf16.msra.mxu0 0
        %1076 = vmatprep.subr.bf16.mxu0 0
        %1077 = vmatpush1.bf16.msra.mxu0 0
        %1078 = vmatprep.subr.bf16.mxu0 0
        %1079 = vmatpush1.bf16.msra.mxu0 0
        %1080 = vmatprep.subr.bf16.mxu0 0
        %1081 = vmatpush1.bf16.msra.mxu0 0
        %1082 = vmatprep.subr.bf16.mxu0 0
        %1083 = vmatpush1.bf16.msra.mxu0 %v1065
        %1084 = vmatprep.subr.bf16.mxu0 0
        %1085 = vmatpush1.bf16.msra.mxu0 %v1064
        %1086 = vmatprep.subr.bf16.mxu0 0
        %1087 = vmatpush2.bf16.msra.mxu0 0
        %1088 = vmatprep.subr.bf16.mxu0 0
        %1089 = vmatpush2.bf16.msra.mxu0 0
        %1090 = vmatprep.subr.bf16.mxu0 0
        %1091 = vmatpush2.bf16.msra.mxu0 0
        %1092 = vmatprep.subr.bf16.mxu0 0
        %1093 = vmatpush2.bf16.msra.mxu0 0
        %1094 = vmatprep.subr.bf16.mxu0 0
        %1095 = vmatpush2.bf16.msra.mxu0 0
        %1096 = vmatprep.subr.bf16.mxu0 0
        %1097 = vmatpush2.bf16.msra.mxu0 0
        %1098 = vmatprep.subr.bf16.mxu0 0
        %1099 = vmatpush2.bf16.msra.mxu0 0
        %1100 = vmatprep.subr.bf16.mxu0 0
        %1101 = vmatpush2.bf16.msra.mxu0 0
        %1102 = vmatprep.mubr.bf16.mxu0 0
        %1103 = vmatmul.mubr.bf16.gmra.mxu0 %v1068
        %v1104 = vpop.f32.mrf.mxu0
        %v1105 = vadd.f32 0.0, %v1104
        %v1106 = vpop.f32.mrf.mxu0
        %v1107 = vpop.f32.mrf.mxu0
        %v1108 = vpop.f32.mrf.mxu0
        %1109 = vdwg.mxu0
        %v1110 = vadd.f32 %v1049, %v1105
        %1111 = vst.msk [vmem:[#allocation4] sm:$0xff] %vm530, %v1110
        // Predicated region
        $region73: #{tpu_custom_call.1} parent=47 // pred_check
          %p1112 = pneg %p484
        $region74: #{tpu_custom_call.1} parent=47 // pred_check_branch
          %1114 = sbr.rel (%p1112) target = $region76
        $region75: #{tpu_custom_call.1} parent=47 // pred_region
          %v1115 = vld [vmem:[#allocation4] sm:$0xff]
          %1116 = vst.msk [vmem:[%s358] sm:$0xff] %vm530, %v1115
        $region76: #{tpu_custom_call.1} parent=47 // pred_fallthru
          _
        %s1117 = sand.u32 %s207, 1
        %s1118 = scalar_lea.sflag [#allocation7], %s1117
        %s1119 = sand.u32 %s207, 1
        %s1120 = smul.addr %s1119, 8
        %s1121 = scalar_lea.vmem [#allocation13], %s1120
        // Predicated region
        $region77: #{tpu_custom_call.1} parent=47 // pred_check
          %p1122 = pneg %p217
        $region78: #{tpu_custom_call.1} parent=47 // pred_check_branch
          %1124 = sbr.rel (%p1122) target = $region80
        $region79: #{tpu_custom_call.1} parent=47 // pred_region
          %s1126 = ssub.s32 128, 128
          %1127 = vsyncadd %s1118, %s1126
          %s1128 = sadd.s32 %s32, %s31
          %s1129 = smul.addr %s1128, 128
          %s1130 = scalar_lea.hbm %s7, %s1129
          %s1132 = sshll.u32 %s1121, 4
          %s1133 = int_to_ptr.vmem [resolvable:$true] %s1132
          %1135 = dma.vmem_to_hbm [thread:$0]  %s1133, 128, %s1130, %s1118
        $region80: #{tpu_custom_call.1} parent=47 // pred_fallthru
          _
      $region48: #{tpu_custom_call.1} parent=5 // pred_fallthru
        _
      %p1136 = scmp.le.s32.totalorder 2, %s21
      // Predicated region
      $region81: #{tpu_custom_call.1} parent=5 // pred_check
        %p1137 = pneg %p1136
      $region82: #{tpu_custom_call.1} parent=5 // pred_check_branch
        %1139 = sbr.rel (%p1137) target = $region84
      $region83: #{tpu_custom_call.1} parent=5 // pred_region
        %s1140 = ssub.s32 %s21, 2
        // Predicated region
        $region85: #{tpu_custom_call.1} parent=83 // pred_check
          %p1141 = pneg %p223
        $region86: #{tpu_custom_call.1} parent=83 // pred_check_branch
          %1143 = sbr.rel (%p1141) target = $region88
        $region87: #{tpu_custom_call.1} parent=83 // pred_region
          %s1144 = sand.u32 %s208, 1
          %s1145 = scalar_lea.sflag [#allocation7], %s1144
          %s1146 = sand.u32 %s208, 1
          %s1147 = smul.addr %s1146, 8
          %s1148 = scalar_lea.vmem [#allocation13], %s1147
          %1149 = dma.done %s1145, 128
        $region88: #{tpu_custom_call.1} parent=83 // pred_fallthru
          _
      $region84: #{tpu_custom_call.1} parent=5 // pred_fallthru
        _
    $region6: #{tpu_custom_call.1} parent=1 // loop_footer
      %s25 = sadd.s32 1, %s21
    $region7: #{tpu_custom_call.1} parent=1 // loop_footer_branch
      %20 = sbr.rel target = $region3
    $region8: #{tpu_custom_call.1} parent=1 // loop_exit
      _
    %1150 = vsyncpa [#allocation6], 1
    %s1151 = scalar_lea.sflag [#allocation6], 1
    %1152 = vsyncpa %s1151, 1
    %1153 = vsyncpa [#allocation9], 1
    %1154 = vsyncpa [#allocation12], 1
    %1155 = vsyncpa [#allocation7], 1
    %s1156 = scalar_lea.sflag [#allocation7], 1
    %1157 = vsyncpa %s1156, 1

</llo_original>
